<compile_context>
chip_gen: v5e
topology: v5e:2x2
jax: 0.10.0
libtpu: 0.0.40
codegen_flags: <defaults>
</compile_context>

<pallas_src>
import functools

import jax
import jax.numpy as jnp
from jax.experimental import pallas as pl
from jax.experimental.pallas import tpu as pltpu


# ----------------------------- Pallas kernel -------------------------------
def lstm_sentiment_kernel(T, Tt, Bb, ragged,                 # static (closed over)
                          emb_ref,                           # (Tt*Bb, E)   bf16
                          wih_f_ref, whh_f_ref, b_f_ref,     # (E,4H) bf16, (H,4H) bf16, (1,4H) f32
                          wih_b_ref, b_b_ref,                # (E,4H) bf16, (1,4H) f32
                          w1f_ref, w1b_ref, b1_ref,          # (H,64) bf16, (H,64) bf16, (1,64) f32
                          w2_ref, b2_ref,                    # (1,64) f32, (1,1) f32
                          out_ref,                           # (Bb, 128) f32 lane-dense slab
                          h_ref, c_ref, xp_ref):             # VMEM scratch: (Bb,H), (Bb,H), (Tt*Bb,4H)
    t_idx = pl.program_id(1)
    n_t = pl.num_programs(1)
    H = whh_f_ref.shape[0]

    # ---- init carried state at the first time block of each batch block ----
    @pl.when(t_idx == 0)
    def _():
        h_ref[...] = jnp.zeros_like(h_ref)
        c_ref[...] = jnp.zeros_like(c_ref)

    # ---- hoisted input projection: one (Tt*Bb, E) @ (E, 4H) matmul per block ----
    # Stored in VMEM scratch (not kept live in vregs) to avoid spills in the loop.
    xp_ref[...] = jnp.dot(emb_ref[...], wih_f_ref[...],
                          preferred_element_type=jnp.float32) + b_f_ref[...]

    h = h_ref[...]
    c = c_ref[...]
    # Serial recurrence over the time block.  Gate order is i|f|o|g so a single
    # sigmoid covers 3H lanes and a single tanh covers H lanes per step.
    for tt in range(Tt):
        gates = xp_ref[tt * Bb:(tt + 1) * Bb, :] + jnp.dot(
            h.astype(jnp.bfloat16), whh_f_ref[...],
            preferred_element_type=jnp.float32)
        sg = jax.nn.sigmoid(gates[:, :3 * H])
        i_g = sg[:, 0 * H:1 * H]
        f_g = sg[:, 1 * H:2 * H]
        o_g = sg[:, 2 * H:3 * H]
        g_g = jnp.tanh(gates[:, 3 * H:4 * H])
        c_new = f_g * c + i_g * g_g
        h_new = o_g * jnp.tanh(c_new)
        if ragged:
            valid = (t_idx * Tt + tt) < T          # mask padded time steps (exact)
            h = jnp.where(valid, h_new, h)
            c = jnp.where(valid, c_new, c)
        else:
            h, c = h_new, c_new
    h_ref[...] = h
    c_ref[...] = c

    # ---- last time block: backward-direction cell + FC head + lane-dense store ----
    @pl.when(t_idx == n_t - 1)
    def _():
        # Backward hidden at t = T-1 equals one cell step on x_{T-1} from zero state:
        # the h_prev @ W_hh_b and f * c_prev terms are identically zero (exact).
        last_local = (T - 1) % Tt
        x_last = emb_ref[last_local * Bb:(last_local + 1) * Bb, :]
        gb = jnp.dot(x_last, wih_b_ref[...],
                     preferred_element_type=jnp.float32) + b_b_ref[...]      # (Bb, 4H)
        ib = jax.nn.sigmoid(gb[:, 0 * H:1 * H])
        ob = jax.nn.sigmoid(gb[:, 2 * H:3 * H])
        gg = jnp.tanh(gb[:, 3 * H:4 * H])
        h_b = ob * jnp.tanh(ib * gg)                                         # (Bb, H) f32

        # FC head; dropout(p=0.3) is identity in eval mode.  fc1 weight is split
        # into forward/backward halves -> no concat on the critical path.
        z1 = (jnp.dot(h.astype(jnp.bfloat16), w1f_ref[...],
                      preferred_element_type=jnp.float32)
              + jnp.dot(h_b.astype(jnp.bfloat16), w1b_ref[...],
                        preferred_element_type=jnp.float32)
              + b1_ref[...])
        z1 = jnp.maximum(z1, 0.0)                                            # relu, (Bb, 64)

        # fc2 (64 -> 1) as a VPU multiply + lane reduction (avoids an N=1 MXU matmul).
        z2 = jnp.sum(z1 * w2_ref[...], axis=-1, keepdims=True) + b2_ref[...]  # (Bb, 1)
        p = jax.nn.sigmoid(z2)

        # Lane-dense output store: broadcast the per-row scalar across 128 lanes;
        # host wrapper slices column 0 (avoids masked vst.msk partial stores).
        out_ref[...] = jnp.broadcast_to(p, out_ref.shape)


# ------------------------------ host wrapper --------------------------------
def lstm_model_forward(x_tokens, params, *, t_blk=16, max_b_blk=256):
    """x_tokens: (B, T) int32 token ids. Returns (B, 1) float32 probabilities."""
    B, T = x_tokens.shape
    H = params["whh_f"].shape[0]
    E = params["embedding"].shape[1]

    # ---- time blocking: clamp to T, pad + mask the ragged tail (no t_blk=1 cliff) ----
    t_blk = max(1, min(t_blk, T))
    n_t = (T + t_blk - 1) // t_blk
    T_pad = n_t * t_blk
    ragged = (T_pad != T)

    # ---- batch blocking: full padded batch per block; ~half on v7x (2 TensorCores) ----
    n_tc = 1
    try:
        if "v7" in jax.devices()[0].device_kind.lower():
            n_tc = 2
    except Exception:
        pass
    Bp8 = ((B + 7) // 8) * 8
    b_blk = min(max_b_blk, Bp8)
    if n_tc > 1 and Bp8 >= 16:
        b_blk = min(b_blk, ((Bp8 + 15) // 16) * 8)     # ~Bp/2, multiple of 8
    b_blk = max(8, (b_blk // 8) * 8)
    n_b = (Bp8 + b_blk - 1) // b_blk
    Bp = n_b * b_blk

    # ---- weight prep: gate reorder i|f|g|o -> i|f|o|g, bf16 matmul operands ----
    def reorder_gates(w):
        return jnp.concatenate([w[..., :2 * H], w[..., 3 * H:4 * H], w[..., 2 * H:3 * H]],
                               axis=-1)

    bf = jnp.bfloat16
    wih_f = reorder_gates(params["wih_f"]).astype(bf)
    whh_f = reorder_gates(params["whh_f"]).astype(bf)
    b_f = reorder_gates(params["b_f"]).astype(jnp.float32)
    wih_b = reorder_gates(params["wih_b"]).astype(bf)
    b_b = reorder_gates(params["b_b"]).astype(jnp.float32)
    w1f = params["w1"][:H, :].astype(bf)
    w1b = params["w1"][H:, :].astype(bf)
    b1 = params["b1"].astype(jnp.float32)
    w2_row = params["w2"].reshape(1, -1).astype(jnp.float32)   # (1, 64)
    b2 = params["b2"].astype(jnp.float32)

    # ---- embedding: single bf16 gather in block/time-major order (one HBM pass) ----
    emb_table = params["embedding"].astype(bf)
    tok = jnp.pad(x_tokens, ((0, Bp - B), (0, T_pad - T)))      # (Bp, T_pad) int32
    tok = tok.reshape(n_b, b_blk, T_pad).transpose(0, 2, 1)     # (n_b, T_pad, b_blk)
    emb = jnp.take(emb_table, tok, axis=0)                      # (n_b, T_pad, b_blk, E) bf16
    emb = emb.reshape(n_b, T_pad * b_blk, E)                    # 2-D matmul LHS per block
    # TODO(synk): for small vocab tables, move this gather in-kernel (scalar-prefetched
    # token block + VMEM-resident table) to skip the (T,B,E) HBM materialization.

    const = lambda b, t: (0, 0)                                 # resident weights

    grid_spec = pltpu.PrefetchScalarGridSpec(
        num_scalar_prefetch=0,
        grid=(n_b, n_t),
        in_specs=[
            pl.BlockSpec((None, t_blk * b_blk, E), lambda b, t: (b, t, 0)),  # emb slab
            pl.BlockSpec((E, 4 * H), const),       # wih_f
            pl.BlockSpec((H, 4 * H), const),       # whh_f
            pl.BlockSpec((1, 4 * H), const),       # b_f
            pl.BlockSpec((E, 4 * H), const),       # wih_b
            pl.BlockSpec((1, 4 * H), const),       # b_b
            pl.BlockSpec((H, 64), const),          # w1 forward half
            pl.BlockSpec((H, 64), const),          # w1 backward half
            pl.BlockSpec((1, 64), const),          # b1
            pl.BlockSpec((1, 64), const),          # w2 row (VPU)
            pl.BlockSpec((1, 1), const),           # b2
        ],
        out_specs=pl.BlockSpec((b_blk, 128), lambda b, t: (b, 0)),
        scratch_shapes=[pltpu.VMEM((b_blk, H), jnp.float32),               # h carry
                        pltpu.VMEM((b_blk, H), jnp.float32),               # c carry
                        pltpu.VMEM((t_blk * b_blk, 4 * H), jnp.float32)],  # xp (hoisted proj)
    )

    # ---- VMEM budget (double-buffered emb + xp scratch + resident weights) ----
    e_pad = ((E + 127) // 128) * 128
    vmem_est = (2 * t_blk * b_blk * e_pad * 2                     # emb double buffer (bf16)
                + t_blk * b_blk * 4 * H * 4                       # xp scratch (f32)
                + 2 * b_blk * H * 4                               # h, c carries
                + 2 * (2 * E * 4 * H * 2 + H * 4 * H * 2 + 2 * H * 64 * 2)  # weights (2 bufs)
                + 2 * b_blk * 128 * 4)                            # output slab
    vmem_limit = int(min(64 * 1024 * 1024, max(32 * 1024 * 1024, int(1.5 * vmem_est))))

    out = pl.pallas_call(
        functools.partial(lstm_sentiment_kernel, T, t_blk, b_blk, ragged),
        out_shape=jax.ShapeDtypeStruct((Bp, 128), jnp.float32),
        grid_spec=grid_spec,
        compiler_params=pltpu.CompilerParams(
            dimension_semantics=("parallel", "arbitrary"),
            vmem_limit_bytes=vmem_limit),
    )(emb, wih_f, whh_f, b_f, wih_b, b_b, w1f, w1b, b1, w2_row, b2)

    return out[:B, :1]


# -------------------------- deterministic params ----------------------------
def init_params(vocab_size, embedding_dim, hidden_dim, key):
    ks = jax.random.split(key, 12)
    H, E = hidden_dim, embedding_dim
    b_lstm = 1.0 / jnp.sqrt(H)

    def unif(k, shape, bound):
        return jax.random.uniform(k, shape, jnp.float32, -bound, bound)

    return {
        # nn.Embedding(vocab_size, E): N(0,1)
        "embedding": jax.random.normal(ks[0], (vocab_size, E), jnp.float32),
        # LSTM weights, pre-transposed to (in_dim, 4H); gate order i|f|g|o (PyTorch);
        # bias = b_ih + b_hh combined
        "wih_f": unif(ks[1], (E, 4 * H), b_lstm),
        "whh_f": unif(ks[2], (H, 4 * H), b_lstm),
        "b_f":   unif(ks[3], (1, 4 * H), b_lstm),
        "wih_b": unif(ks[4], (E, 4 * H), b_lstm),
        "whh_b": unif(ks[5], (H, 4 * H), b_lstm),   # unused by last-step head (h_prev == 0)
        "b_b":   unif(ks[6], (1, 4 * H), b_lstm),
        # fc1: Linear(2H, 64), fc2: Linear(64, 1); stored as (in, out)
        "w1": unif(ks[7], (2 * H, 64), 1.0 / jnp.sqrt(2 * H)),
        "b1": unif(ks[8], (1, 64), 1.0 / jnp.sqrt(2 * H)),
        "w2": unif(ks[9], (64, 1), 1.0 / jnp.sqrt(64)),
        "b2": unif(ks[10], (1, 1), 1.0 / jnp.sqrt(64)),
    }


# ------------------------- pure-JAX reference check --------------------------
def reference_forward(x_tokens, params):
    emb = jnp.take(params["embedding"], x_tokens, axis=0).astype(jnp.float32)
    B, T, _ = emb.shape
    H = params["whh_f"].shape[0]

    def cell(x_t, h, c, wih, whh, b):
        g = x_t @ wih + h @ whh + b
        i, f, gg, o = (jax.nn.sigmoid(g[:, :H]), jax.nn.sigmoid(g[:, H:2 * H]),
                       jnp.tanh(g[:, 2 * H:3 * H]), jax.nn.sigmoid(g[:, 3 * H:]))
        c = f * c + i * gg
        return o * jnp.tanh(c), c

    h = c = jnp.zeros((B, H), jnp.float32)
    for t in range(T):
        h, c = cell(emb[:, t, :], h, c, params["wih_f"], params["whh_f"], params["b_f"])
    hb = cb = jnp.zeros((B, H), jnp.float32)
    hb, cb = cell(emb[:, T - 1, :], hb, cb, params["wih_b"], params["whh_b"], params["b_b"])
    last = jnp.concatenate([h, hb], axis=-1)
    z1 = jnp.maximum(last @ params["w1"] + params["b1"], 0.0)
    return jax.nn.sigmoid(z1 @ params["w2"] + params["b2"])


if __name__ == "__main__":
    VOCAB, EMB_DIM, HIDDEN = 50, 64, 128
    B, T = 2, 8

    key = jax.random.PRNGKey(0)
    k_params, k_tokens = jax.random.split(key)
    params = init_params(VOCAB, EMB_DIM, HIDDEN, k_params)
    x_tokens = jax.random.randint(k_tokens, (B, T), 0, VOCAB, dtype=jnp.int32)

    out = lstm_model_forward(x_tokens, params)
    out = jax.block_until_ready(out)

    ref = reference_forward(x_tokens, params)
    assert out.shape == (B, 1)
    assert bool(jnp.all(jnp.isfinite(out)))
    # bf16 matmul operands (f32 accumulation) vs f32 reference -> loose tolerance.
    assert bool(jnp.allclose(out, ref, atol=2e-2, rtol=2e-2)), (out, ref)

    print("KERNEL_OK")
</pallas_src>

<mosaic_0001>
module attributes {stable_mosaic.version = 11 : i64} {
  func.func @lstm_sentiment_kernel(%arg0: i32, %arg1: i32, %arg2: memref<1x64x64xbf16, #tpu.memory_space<vmem>>, %arg3: memref<64x512xbf16, #tpu.memory_space<vmem>>, %arg4: memref<128x512xbf16, #tpu.memory_space<vmem>>, %arg5: memref<1x512xf32, #tpu.memory_space<vmem>>, %arg6: memref<64x512xbf16, #tpu.memory_space<vmem>>, %arg7: memref<1x512xf32, #tpu.memory_space<vmem>>, %arg8: memref<128x64xbf16, #tpu.memory_space<vmem>>, %arg9: memref<128x64xbf16, #tpu.memory_space<vmem>>, %arg10: memref<1x64xf32, #tpu.memory_space<vmem>>, %arg11: memref<1x64xf32, #tpu.memory_space<vmem>>, %arg12: memref<1x1xf32, #tpu.memory_space<vmem>>, %arg13: memref<8x128xf32, #tpu.memory_space<vmem>>, %arg14: memref<8x128xf32, #tpu.memory_space<vmem>>, %arg15: memref<8x128xf32, #tpu.memory_space<vmem>>, %arg16: memref<64x512xf32, #tpu.memory_space<vmem>>) attributes {dimension_semantics = [#tpu.dimension_semantics<parallel>, #tpu.dimension_semantics<arbitrary>], iteration_bounds = array<i64: 1, 1>, scalar_prefetch = 0 : i64, scratch_operands = 3 : i64, tpu.core_type = #tpu.core_type<tc>, window_params = [{transform_indices = @transform_0, window_bounds = array<i64: 1, 64, 64>}, {pipeline_mode = #tpu.pipeline_mode<synchronous>, transform_indices = @transform_1, window_bounds = array<i64: 64, 512>}, {pipeline_mode = #tpu.pipeline_mode<synchronous>, transform_indices = @transform_2, window_bounds = array<i64: 128, 512>}, {pipeline_mode = #tpu.pipeline_mode<synchronous>, transform_indices = @transform_3, window_bounds = array<i64: 1, 512>}, {pipeline_mode = #tpu.pipeline_mode<synchronous>, transform_indices = @transform_4, window_bounds = array<i64: 64, 512>}, {pipeline_mode = #tpu.pipeline_mode<synchronous>, transform_indices = @transform_5, window_bounds = array<i64: 1, 512>}, {pipeline_mode = #tpu.pipeline_mode<synchronous>, transform_indices = @transform_6, window_bounds = array<i64: 128, 64>}, {pipeline_mode = #tpu.pipeline_mode<synchronous>, transform_indices = @transform_7, window_bounds = array<i64: 128, 64>}, {pipeline_mode = #tpu.pipeline_mode<synchronous>, transform_indices = @transform_8, window_bounds = array<i64: 1, 64>}, {pipeline_mode = #tpu.pipeline_mode<synchronous>, transform_indices = @transform_9, window_bounds = array<i64: 1, 64>}, {pipeline_mode = #tpu.pipeline_mode<synchronous>, transform_indices = @transform_10, window_bounds = array<i64: 1, 1>}, {transform_indices = @transform_11, window_bounds = array<i64: 8, 128>}]} {
    %c0_i32 = arith.constant 0 : i32
    %0 = arith.cmpi eq, %arg1, %c0_i32 : i32
    %1 = arith.extui %0 : i1 to i32
    %c0_i32_0 = arith.constant 0 : i32
    %2 = arith.cmpi ne, %1, %c0_i32_0 : i32
    scf.if %2 {
      %cst_60 = arith.constant 0.000000e+00 : f32
      %186 = vector.broadcast %cst_60 : f32 to vector<8x128xf32>
      %c0_61 = arith.constant 0 : index
      %c0_62 = arith.constant 0 : index
      %187 = vector.load %arg14[%c0_61, %c0_62] : memref<8x128xf32, #tpu.memory_space<vmem>>, vector<8x128xf32>
      tpu.vector_store %arg14[%c0_61, %c0_62], %186 {strides = array<i32>} : memref<8x128xf32, #tpu.memory_space<vmem>>, vector<8x128xf32>,
      %cst_63 = arith.constant 0.000000e+00 : f32
      %188 = vector.broadcast %cst_63 : f32 to vector<8x128xf32>
      %c0_64 = arith.constant 0 : index
      %c0_65 = arith.constant 0 : index
      %189 = vector.load %arg15[%c0_64, %c0_65] : memref<8x128xf32, #tpu.memory_space<vmem>>, vector<8x128xf32>
      tpu.vector_store %arg15[%c0_64, %c0_65], %188 {strides = array<i32>} : memref<8x128xf32, #tpu.memory_space<vmem>>, vector<8x128xf32>,
    } else {
    }
    %c0 = arith.constant 0 : index
    %c0_1 = arith.constant 0 : index
    %c0_2 = arith.constant 0 : index
    %3 = vector.load %arg2[%c0, %c0_1, %c0_2] : memref<1x64x64xbf16, #tpu.memory_space<vmem>>, vector<1x64x64xbf16>
    %4 = vector.shape_cast %3 : vector<1x64x64xbf16> to vector<64x64xbf16>
    %c0_3 = arith.constant 0 : index
    %c0_4 = arith.constant 0 : index
    %5 = vector.load %arg3[%c0_3, %c0_4] : memref<64x512xbf16, #tpu.memory_space<vmem>>, vector<64x512xbf16>
    %cst = arith.constant dense<0.000000e+00> : vector<64x512xf32>
    %6 = tpu.matmul %4, %5, %cst {dimension_numbers = #tpu.dot_dimension_numbers<[1], [0], [0], [1], [0, 0, 1, 1], [], []>} : vector<64x64xbf16>, vector<64x512xbf16>, vector<64x512xf32> -> vector<64x512xf32>
    %c0_5 = arith.constant 0 : index
    %c0_6 = arith.constant 0 : index
    %7 = vector.load %arg5[%c0_5, %c0_6] : memref<1x512xf32, #tpu.memory_space<vmem>>, vector<1x512xf32>
    %8 = vector.broadcast %7 : vector<1x512xf32> to vector<64x512xf32>
    %9 = arith.addf %6, %8 : vector<64x512xf32>
    %c0_7 = arith.constant 0 : index
    %c0_8 = arith.constant 0 : index
    %10 = vector.load %arg16[%c0_7, %c0_8] : memref<64x512xf32, #tpu.memory_space<vmem>>, vector<64x512xf32>
    tpu.vector_store %arg16[%c0_7, %c0_8], %9 {strides = array<i32>} : memref<64x512xf32, #tpu.memory_space<vmem>>, vector<64x512xf32>,
    %c0_9 = arith.constant 0 : index
    %c0_10 = arith.constant 0 : index
    %11 = vector.load %arg14[%c0_9, %c0_10] : memref<8x128xf32, #tpu.memory_space<vmem>>, vector<8x128xf32>
    %c0_11 = arith.constant 0 : index
    %c0_12 = arith.constant 0 : index
    %12 = vector.load %arg15[%c0_11, %c0_12] : memref<8x128xf32, #tpu.memory_space<vmem>>, vector<8x128xf32>
    %c0_13 = arith.constant 0 : index
    %c0_14 = arith.constant 0 : index
    %13 = vector.load %arg16[%c0_13, %c0_14] : memref<64x512xf32, #tpu.memory_space<vmem>>, vector<8x512xf32>
    %14 = arith.truncf %11 : vector<8x128xf32> to vector<8x128xbf16>
    %c0_15 = arith.constant 0 : index
    %c0_16 = arith.constant 0 : index
    %15 = vector.load %arg4[%c0_15, %c0_16] : memref<128x512xbf16, #tpu.memory_space<vmem>>, vector<128x512xbf16>
    %cst_17 = arith.constant dense<0.000000e+00> : vector<8x512xf32>
    %16 = tpu.matmul %14, %15, %cst_17 {dimension_numbers = #tpu.dot_dimension_numbers<[1], [0], [0], [1], [0, 0, 1, 1], [], []>} : vector<8x128xbf16>, vector<128x512xbf16>, vector<8x512xf32> -> vector<8x512xf32>
    %17 = arith.addf %13, %16 : vector<8x512xf32>
    %18 = vector.extract_strided_slice %17 {offsets = [0, 0], sizes = [8, 384], strides = [1, 1]} : vector<8x512xf32> to vector<8x384xf32>
    %19 = arith.negf %18 : vector<8x384xf32>
    %20 = math.exp %19 : vector<8x384xf32>
    %cst_18 = arith.constant 1.000000e+00 : f32
    %21 = vector.broadcast %cst_18 : f32 to vector<8x384xf32>
    %22 = arith.addf %21, %20 : vector<8x384xf32>
    %23 = arith.divf %21, %22 : vector<8x384xf32>
    %24 = vector.extract_strided_slice %23 {offsets = [0, 0], sizes = [8, 128], strides = [1, 1]} : vector<8x384xf32> to vector<8x128xf32>
    %25 = vector.extract_strided_slice %23 {offsets = [0, 128], sizes = [8, 128], strides = [1, 1]} : vector<8x384xf32> to vector<8x128xf32>
    %26 = vector.extract_strided_slice %23 {offsets = [0, 256], sizes = [8, 128], strides = [1, 1]} : vector<8x384xf32> to vector<8x128xf32>
    %27 = vector.extract_strided_slice %17 {offsets = [0, 384], sizes = [8, 128], strides = [1, 1]} : vector<8x512xf32> to vector<8x128xf32>
    %28 = math.tanh %27 : vector<8x128xf32>
    %29 = arith.mulf %25, %12 : vector<8x128xf32>
    %30 = arith.mulf %24, %28 : vector<8x128xf32>
    %31 = arith.addf %29, %30 : vector<8x128xf32>
    %32 = math.tanh %31 : vector<8x128xf32>
    %33 = arith.mulf %26, %32 : vector<8x128xf32>
    %c8 = arith.constant 8 : index
    %c0_19 = arith.constant 0 : index
    %34 = vector.load %arg16[%c8, %c0_19] : memref<64x512xf32, #tpu.memory_space<vmem>>, vector<8x512xf32>
    %35 = arith.truncf %33 : vector<8x128xf32> to vector<8x128xbf16>
    %c0_20 = arith.constant 0 : index
    %c0_21 = arith.constant 0 : index
    %36 = vector.load %arg4[%c0_20, %c0_21] : memref<128x512xbf16, #tpu.memory_space<vmem>>, vector<128x512xbf16>
    %cst_22 = arith.constant dense<0.000000e+00> : vector<8x512xf32>
    %37 = tpu.matmul %35, %36, %cst_22 {dimension_numbers = #tpu.dot_dimension_numbers<[1], [0], [0], [1], [0, 0, 1, 1], [], []>} : vector<8x128xbf16>, vector<128x512xbf16>, vector<8x512xf32> -> vector<8x512xf32>
    %38 = arith.addf %34, %37 : vector<8x512xf32>
    %39 = vector.extract_strided_slice %38 {offsets = [0, 0], sizes = [8, 384], strides = [1, 1]} : vector<8x512xf32> to vector<8x384xf32>
    %40 = arith.negf %39 : vector<8x384xf32>
    %41 = math.exp %40 : vector<8x384xf32>
    %cst_23 = arith.constant 1.000000e+00 : f32
    %42 = vector.broadcast %cst_23 : f32 to vector<8x384xf32>
    %43 = arith.addf %42, %41 : vector<8x384xf32>
    %44 = arith.divf %42, %43 : vector<8x384xf32>
    %45 = vector.extract_strided_slice %44 {offsets = [0, 0], sizes = [8, 128], strides = [1, 1]} : vector<8x384xf32> to vector<8x128xf32>
    %46 = vector.extract_strided_slice %44 {offsets = [0, 128], sizes = [8, 128], strides = [1, 1]} : vector<8x384xf32> to vector<8x128xf32>
    %47 = vector.extract_strided_slice %44 {offsets = [0, 256], sizes = [8, 128], strides = [1, 1]} : vector<8x384xf32> to vector<8x128xf32>
    %48 = vector.extract_strided_slice %38 {offsets = [0, 384], sizes = [8, 128], strides = [1, 1]} : vector<8x512xf32> to vector<8x128xf32>
    %49 = math.tanh %48 : vector<8x128xf32>
    %50 = arith.mulf %46, %31 : vector<8x128xf32>
    %51 = arith.mulf %45, %49 : vector<8x128xf32>
    %52 = arith.addf %50, %51 : vector<8x128xf32>
    %53 = math.tanh %52 : vector<8x128xf32>
    %54 = arith.mulf %47, %53 : vector<8x128xf32>
    %c16 = arith.constant 16 : index
    %c0_24 = arith.constant 0 : index
    %55 = vector.load %arg16[%c16, %c0_24] : memref<64x512xf32, #tpu.memory_space<vmem>>, vector<8x512xf32>
    %56 = arith.truncf %54 : vector<8x128xf32> to vector<8x128xbf16>
    %c0_25 = arith.constant 0 : index
    %c0_26 = arith.constant 0 : index
    %57 = vector.load %arg4[%c0_25, %c0_26] : memref<128x512xbf16, #tpu.memory_space<vmem>>, vector<128x512xbf16>
    %cst_27 = arith.constant dense<0.000000e+00> : vector<8x512xf32>
    %58 = tpu.matmul %56, %57, %cst_27 {dimension_numbers = #tpu.dot_dimension_numbers<[1], [0], [0], [1], [0, 0, 1, 1], [], []>} : vector<8x128xbf16>, vector<128x512xbf16>, vector<8x512xf32> -> vector<8x512xf32>
    %59 = arith.addf %55, %58 : vector<8x512xf32>
    %60 = vector.extract_strided_slice %59 {offsets = [0, 0], sizes = [8, 384], strides = [1, 1]} : vector<8x512xf32> to vector<8x384xf32>
    %61 = arith.negf %60 : vector<8x384xf32>
    %62 = math.exp %61 : vector<8x384xf32>
    %cst_28 = arith.constant 1.000000e+00 : f32
    %63 = vector.broadcast %cst_28 : f32 to vector<8x384xf32>
    %64 = arith.addf %63, %62 : vector<8x384xf32>
    %65 = arith.divf %63, %64 : vector<8x384xf32>
    %66 = vector.extract_strided_slice %65 {offsets = [0, 0], sizes = [8, 128], strides = [1, 1]} : vector<8x384xf32> to vector<8x128xf32>
    %67 = vector.extract_strided_slice %65 {offsets = [0, 128], sizes = [8, 128], strides = [1, 1]} : vector<8x384xf32> to vector<8x128xf32>
    %68 = vector.extract_strided_slice %65 {offsets = [0, 256], sizes = [8, 128], strides = [1, 1]} : vector<8x384xf32> to vector<8x128xf32>
    %69 = vector.extract_strided_slice %59 {offsets = [0, 384], sizes = [8, 128], strides = [1, 1]} : vector<8x512xf32> to vector<8x128xf32>
    %70 = math.tanh %69 : vector<8x128xf32>
    %71 = arith.mulf %67, %52 : vector<8x128xf32>
    %72 = arith.mulf %66, %70 : vector<8x128xf32>
    %73 = arith.addf %71, %72 : vector<8x128xf32>
    %74 = math.tanh %73 : vector<8x128xf32>
    %75 = arith.mulf %68, %74 : vector<8x128xf32>
    %c24 = arith.constant 24 : index
    %c0_29 = arith.constant 0 : index
    %76 = vector.load %arg16[%c24, %c0_29] : memref<64x512xf32, #tpu.memory_space<vmem>>, vector<8x512xf32>
    %77 = arith.truncf %75 : vector<8x128xf32> to vector<8x128xbf16>
    %c0_30 = arith.constant 0 : index
    %c0_31 = arith.constant 0 : index
    %78 = vector.load %arg4[%c0_30, %c0_31] : memref<128x512xbf16, #tpu.memory_space<vmem>>, vector<128x512xbf16>
    %cst_32 = arith.constant dense<0.000000e+00> : vector<8x512xf32>
    %79 = tpu.matmul %77, %78, %cst_32 {dimension_numbers = #tpu.dot_dimension_numbers<[1], [0], [0], [1], [0, 0, 1, 1], [], []>} : vector<8x128xbf16>, vector<128x512xbf16>, vector<8x512xf32> -> vector<8x512xf32>
    %80 = arith.addf %76, %79 : vector<8x512xf32>
    %81 = vector.extract_strided_slice %80 {offsets = [0, 0], sizes = [8, 384], strides = [1, 1]} : vector<8x512xf32> to vector<8x384xf32>
    %82 = arith.negf %81 : vector<8x384xf32>
    %83 = math.exp %82 : vector<8x384xf32>
    %cst_33 = arith.constant 1.000000e+00 : f32
    %84 = vector.broadcast %cst_33 : f32 to vector<8x384xf32>
    %85 = arith.addf %84, %83 : vector<8x384xf32>
    %86 = arith.divf %84, %85 : vector<8x384xf32>
    %87 = vector.extract_strided_slice %86 {offsets = [0, 0], sizes = [8, 128], strides = [1, 1]} : vector<8x384xf32> to vector<8x128xf32>
    %88 = vector.extract_strided_slice %86 {offsets = [0, 128], sizes = [8, 128], strides = [1, 1]} : vector<8x384xf32> to vector<8x128xf32>
    %89 = vector.extract_strided_slice %86 {offsets = [0, 256], sizes = [8, 128], strides = [1, 1]} : vector<8x384xf32> to vector<8x128xf32>
    %90 = vector.extract_strided_slice %80 {offsets = [0, 384], sizes = [8, 128], strides = [1, 1]} : vector<8x512xf32> to vector<8x128xf32>
    %91 = math.tanh %90 : vector<8x128xf32>
    %92 = arith.mulf %88, %73 : vector<8x128xf32>
    %93 = arith.mulf %87, %91 : vector<8x128xf32>
    %94 = arith.addf %92, %93 : vector<8x128xf32>
    %95 = math.tanh %94 : vector<8x128xf32>
    %96 = arith.mulf %89, %95 : vector<8x128xf32>
    %c32 = arith.constant 32 : index
    %c0_34 = arith.constant 0 : index
    %97 = vector.load %arg16[%c32, %c0_34] : memref<64x512xf32, #tpu.memory_space<vmem>>, vector<8x512xf32>
    %98 = arith.truncf %96 : vector<8x128xf32> to vector<8x128xbf16>
    %c0_35 = arith.constant 0 : index
    %c0_36 = arith.constant 0 : index
    %99 = vector.load %arg4[%c0_35, %c0_36] : memref<128x512xbf16, #tpu.memory_space<vmem>>, vector<128x512xbf16>
    %cst_37 = arith.constant dense<0.000000e+00> : vector<8x512xf32>
    %100 = tpu.matmul %98, %99, %cst_37 {dimension_numbers = #tpu.dot_dimension_numbers<[1], [0], [0], [1], [0, 0, 1, 1], [], []>} : vector<8x128xbf16>, vector<128x512xbf16>, vector<8x512xf32> -> vector<8x512xf32>
    %101 = arith.addf %97, %100 : vector<8x512xf32>
    %102 = vector.extract_strided_slice %101 {offsets = [0, 0], sizes = [8, 384], strides = [1, 1]} : vector<8x512xf32> to vector<8x384xf32>
    %103 = arith.negf %102 : vector<8x384xf32>
    %104 = math.exp %103 : vector<8x384xf32>
    %cst_38 = arith.constant 1.000000e+00 : f32
    %105 = vector.broadcast %cst_38 : f32 to vector<8x384xf32>
    %106 = arith.addf %105, %104 : vector<8x384xf32>
    %107 = arith.divf %105, %106 : vector<8x384xf32>
    %108 = vector.extract_strided_slice %107 {offsets = [0, 0], sizes = [8, 128], strides = [1, 1]} : vector<8x384xf32> to vector<8x128xf32>
    %109 = vector.extract_strided_slice %107 {offsets = [0, 128], sizes = [8, 128], strides = [1, 1]} : vector<8x384xf32> to vector<8x128xf32>
    %110 = vector.extract_strided_slice %107 {offsets = [0, 256], sizes = [8, 128], strides = [1, 1]} : vector<8x384xf32> to vector<8x128xf32>
    %111 = vector.extract_strided_slice %101 {offsets = [0, 384], sizes = [8, 128], strides = [1, 1]} : vector<8x512xf32> to vector<8x128xf32>
    %112 = math.tanh %111 : vector<8x128xf32>
    %113 = arith.mulf %109, %94 : vector<8x128xf32>
    %114 = arith.mulf %108, %112 : vector<8x128xf32>
    %115 = arith.addf %113, %114 : vector<8x128xf32>
    %116 = math.tanh %115 : vector<8x128xf32>
    %117 = arith.mulf %110, %116 : vector<8x128xf32>
    %c40 = arith.constant 40 : index
    %c0_39 = arith.constant 0 : index
    %118 = vector.load %arg16[%c40, %c0_39] : memref<64x512xf32, #tpu.memory_space<vmem>>, vector<8x512xf32>
    %119 = arith.truncf %117 : vector<8x128xf32> to vector<8x128xbf16>
    %c0_40 = arith.constant 0 : index
    %c0_41 = arith.constant 0 : index
    %120 = vector.load %arg4[%c0_40, %c0_41] : memref<128x512xbf16, #tpu.memory_space<vmem>>, vector<128x512xbf16>
    %cst_42 = arith.constant dense<0.000000e+00> : vector<8x512xf32>
    %121 = tpu.matmul %119, %120, %cst_42 {dimension_numbers = #tpu.dot_dimension_numbers<[1], [0], [0], [1], [0, 0, 1, 1], [], []>} : vector<8x128xbf16>, vector<128x512xbf16>, vector<8x512xf32> -> vector<8x512xf32>
    %122 = arith.addf %118, %121 : vector<8x512xf32>
    %123 = vector.extract_strided_slice %122 {offsets = [0, 0], sizes = [8, 384], strides = [1, 1]} : vector<8x512xf32> to vector<8x384xf32>
    %124 = arith.negf %123 : vector<8x384xf32>
    %125 = math.exp %124 : vector<8x384xf32>
    %cst_43 = arith.constant 1.000000e+00 : f32
    %126 = vector.broadcast %cst_43 : f32 to vector<8x384xf32>
    %127 = arith.addf %126, %125 : vector<8x384xf32>
    %128 = arith.divf %126, %127 : vector<8x384xf32>
    %129 = vector.extract_strided_slice %128 {offsets = [0, 0], sizes = [8, 128], strides = [1, 1]} : vector<8x384xf32> to vector<8x128xf32>
    %130 = vector.extract_strided_slice %128 {offsets = [0, 128], sizes = [8, 128], strides = [1, 1]} : vector<8x384xf32> to vector<8x128xf32>
    %131 = vector.extract_strided_slice %128 {offsets = [0, 256], sizes = [8, 128], strides = [1, 1]} : vector<8x384xf32> to vector<8x128xf32>
    %132 = vector.extract_strided_slice %122 {offsets = [0, 384], sizes = [8, 128], strides = [1, 1]} : vector<8x512xf32> to vector<8x128xf32>
    %133 = math.tanh %132 : vector<8x128xf32>
    %134 = arith.mulf %130, %115 : vector<8x128xf32>
    %135 = arith.mulf %129, %133 : vector<8x128xf32>
    %136 = arith.addf %134, %135 : vector<8x128xf32>
    %137 = math.tanh %136 : vector<8x128xf32>
    %138 = arith.mulf %131, %137 : vector<8x128xf32>
    %c48 = arith.constant 48 : index
    %c0_44 = arith.constant 0 : index
    %139 = vector.load %arg16[%c48, %c0_44] : memref<64x512xf32, #tpu.memory_space<vmem>>, vector<8x512xf32>
    %140 = arith.truncf %138 : vector<8x128xf32> to vector<8x128xbf16>
    %c0_45 = arith.constant 0 : index
    %c0_46 = arith.constant 0 : index
    %141 = vector.load %arg4[%c0_45, %c0_46] : memref<128x512xbf16, #tpu.memory_space<vmem>>, vector<128x512xbf16>
    %cst_47 = arith.constant dense<0.000000e+00> : vector<8x512xf32>
    %142 = tpu.matmul %140, %141, %cst_47 {dimension_numbers = #tpu.dot_dimension_numbers<[1], [0], [0], [1], [0, 0, 1, 1], [], []>} : vector<8x128xbf16>, vector<128x512xbf16>, vector<8x512xf32> -> vector<8x512xf32>
    %143 = arith.addf %139, %142 : vector<8x512xf32>
    %144 = vector.extract_strided_slice %143 {offsets = [0, 0], sizes = [8, 384], strides = [1, 1]} : vector<8x512xf32> to vector<8x384xf32>
    %145 = arith.negf %144 : vector<8x384xf32>
    %146 = math.exp %145 : vector<8x384xf32>
    %cst_48 = arith.constant 1.000000e+00 : f32
    %147 = vector.broadcast %cst_48 : f32 to vector<8x384xf32>
    %148 = arith.addf %147, %146 : vector<8x384xf32>
    %149 = arith.divf %147, %148 : vector<8x384xf32>
    %150 = vector.extract_strided_slice %149 {offsets = [0, 0], sizes = [8, 128], strides = [1, 1]} : vector<8x384xf32> to vector<8x128xf32>
    %151 = vector.extract_strided_slice %149 {offsets = [0, 128], sizes = [8, 128], strides = [1, 1]} : vector<8x384xf32> to vector<8x128xf32>
    %152 = vector.extract_strided_slice %149 {offsets = [0, 256], sizes = [8, 128], strides = [1, 1]} : vector<8x384xf32> to vector<8x128xf32>
    %153 = vector.extract_strided_slice %143 {offsets = [0, 384], sizes = [8, 128], strides = [1, 1]} : vector<8x512xf32> to vector<8x128xf32>
    %154 = math.tanh %153 : vector<8x128xf32>
    %155 = arith.mulf %151, %136 : vector<8x128xf32>
    %156 = arith.mulf %150, %154 : vector<8x128xf32>
    %157 = arith.addf %155, %156 : vector<8x128xf32>
    %158 = math.tanh %157 : vector<8x128xf32>
    %159 = arith.mulf %152, %158 : vector<8x128xf32>
    %c56 = arith.constant 56 : index
    %c0_49 = arith.constant 0 : index
    %160 = vector.load %arg16[%c56, %c0_49] : memref<64x512xf32, #tpu.memory_space<vmem>>, vector<8x512xf32>
    %161 = arith.truncf %159 : vector<8x128xf32> to vector<8x128xbf16>
    %c0_50 = arith.constant 0 : index
    %c0_51 = arith.constant 0 : index
    %162 = vector.load %arg4[%c0_50, %c0_51] : memref<128x512xbf16, #tpu.memory_space<vmem>>, vector<128x512xbf16>
    %cst_52 = arith.constant dense<0.000000e+00> : vector<8x512xf32>
    %163 = tpu.matmul %161, %162, %cst_52 {dimension_numbers = #tpu.dot_dimension_numbers<[1], [0], [0], [1], [0, 0, 1, 1], [], []>} : vector<8x128xbf16>, vector<128x512xbf16>, vector<8x512xf32> -> vector<8x512xf32>
    %164 = arith.addf %160, %163 : vector<8x512xf32>
    %165 = vector.extract_strided_slice %164 {offsets = [0, 0], sizes = [8, 384], strides = [1, 1]} : vector<8x512xf32> to vector<8x384xf32>
    %166 = arith.negf %165 : vector<8x384xf32>
    %167 = math.exp %166 : vector<8x384xf32>
    %cst_53 = arith.constant 1.000000e+00 : f32
    %168 = vector.broadcast %cst_53 : f32 to vector<8x384xf32>
    %169 = arith.addf %168, %167 : vector<8x384xf32>
    %170 = arith.divf %168, %169 : vector<8x384xf32>
    %171 = vector.extract_strided_slice %170 {offsets = [0, 0], sizes = [8, 128], strides = [1, 1]} : vector<8x384xf32> to vector<8x128xf32>
    %172 = vector.extract_strided_slice %170 {offsets = [0, 128], sizes = [8, 128], strides = [1, 1]} : vector<8x384xf32> to vector<8x128xf32>
    %173 = vector.extract_strided_slice %170 {offsets = [0, 256], sizes = [8, 128], strides = [1, 1]} : vector<8x384xf32> to vector<8x128xf32>
    %174 = vector.extract_strided_slice %164 {offsets = [0, 384], sizes = [8, 128], strides = [1, 1]} : vector<8x512xf32> to vector<8x128xf32>
    %175 = math.tanh %174 : vector<8x128xf32>
    %176 = arith.mulf %172, %157 : vector<8x128xf32>
    %177 = arith.mulf %171, %175 : vector<8x128xf32>
    %178 = arith.addf %176, %177 : vector<8x128xf32>
    %179 = math.tanh %178 : vector<8x128xf32>
    %180 = arith.mulf %173, %179 : vector<8x128xf32>
    %c0_54 = arith.constant 0 : index
    %c0_55 = arith.constant 0 : index
    %181 = vector.load %arg14[%c0_54, %c0_55] : memref<8x128xf32, #tpu.memory_space<vmem>>, vector<8x128xf32>
    tpu.vector_store %arg14[%c0_54, %c0_55], %180 {strides = array<i32>} : memref<8x128xf32, #tpu.memory_space<vmem>>, vector<8x128xf32>,
    %c0_56 = arith.constant 0 : index
    %c0_57 = arith.constant 0 : index
    %182 = vector.load %arg15[%c0_56, %c0_57] : memref<8x128xf32, #tpu.memory_space<vmem>>, vector<8x128xf32>
    tpu.vector_store %arg15[%c0_56, %c0_57], %178 {strides = array<i32>} : memref<8x128xf32, #tpu.memory_space<vmem>>, vector<8x128xf32>,
    %c0_i32_58 = arith.constant 0 : i32
    %183 = arith.cmpi eq, %arg1, %c0_i32_58 : i32
    %184 = arith.extui %183 : i1 to i32
    %c0_i32_59 = arith.constant 0 : i32
    %185 = arith.cmpi ne, %184, %c0_i32_59 : i32
    scf.if %185 {
      %c0_60 = arith.constant 0 : index
      %c56_61 = arith.constant 56 : index
      %c0_62 = arith.constant 0 : index
      %186 = vector.load %arg2[%c0_60, %c56_61, %c0_62] : memref<1x64x64xbf16, #tpu.memory_space<vmem>>, vector<1x8x64xbf16>
      %187 = vector.shape_cast %186 : vector<1x8x64xbf16> to vector<8x64xbf16>
      %c0_63 = arith.constant 0 : index
      %c0_64 = arith.constant 0 : index
      %188 = vector.load %arg6[%c0_63, %c0_64] : memref<64x512xbf16, #tpu.memory_space<vmem>>, vector<64x512xbf16>
      %cst_65 = arith.constant dense<0.000000e+00> : vector<8x512xf32>
      %189 = tpu.matmul %187, %188, %cst_65 {dimension_numbers = #tpu.dot_dimension_numbers<[1], [0], [0], [1], [0, 0, 1, 1], [], []>} : vector<8x64xbf16>, vector<64x512xbf16>, vector<8x512xf32> -> vector<8x512xf32>
      %c0_66 = arith.constant 0 : index
      %c0_67 = arith.constant 0 : index
      %190 = vector.load %arg7[%c0_66, %c0_67] : memref<1x512xf32, #tpu.memory_space<vmem>>, vector<1x512xf32>
      %191 = vector.broadcast %190 : vector<1x512xf32> to vector<8x512xf32>
      %192 = arith.addf %189, %191 : vector<8x512xf32>
      %193 = vector.extract_strided_slice %192 {offsets = [0, 0], sizes = [8, 128], strides = [1, 1]} : vector<8x512xf32> to vector<8x128xf32>
      %194 = arith.negf %193 : vector<8x128xf32>
      %195 = math.exp %194 : vector<8x128xf32>
      %cst_68 = arith.constant 1.000000e+00 : f32
      %196 = vector.broadcast %cst_68 : f32 to vector<8x128xf32>
      %197 = arith.addf %196, %195 : vector<8x128xf32>
      %198 = arith.divf %196, %197 : vector<8x128xf32>
      %199 = vector.extract_strided_slice %192 {offsets = [0, 256], sizes = [8, 128], strides = [1, 1]} : vector<8x512xf32> to vector<8x128xf32>
      %200 = arith.negf %199 : vector<8x128xf32>
      %201 = math.exp %200 : vector<8x128xf32>
      %cst_69 = arith.constant 1.000000e+00 : f32
      %202 = vector.broadcast %cst_69 : f32 to vector<8x128xf32>
      %203 = arith.addf %202, %201 : vector<8x128xf32>
      %204 = arith.divf %202, %203 : vector<8x128xf32>
      %205 = vector.extract_strided_slice %192 {offsets = [0, 384], sizes = [8, 128], strides = [1, 1]} : vector<8x512xf32> to vector<8x128xf32>
      %206 = math.tanh %205 : vector<8x128xf32>
      %207 = arith.mulf %198, %206 : vector<8x128xf32>
      %208 = math.tanh %207 : vector<8x128xf32>
      %209 = arith.mulf %204, %208 : vector<8x128xf32>
      %210 = arith.truncf %180 : vector<8x128xf32> to vector<8x128xbf16>
      %c0_70 = arith.constant 0 : index
      %c0_71 = arith.constant 0 : index
      %211 = vector.load %arg8[%c0_70, %c0_71] : memref<128x64xbf16, #tpu.memory_space<vmem>>, vector<128x64xbf16>
      %cst_72 = arith.constant dense<0.000000e+00> : vector<8x64xf32>
      %212 = tpu.matmul %210, %211, %cst_72 {dimension_numbers = #tpu.dot_dimension_numbers<[1], [0], [0], [1], [0, 0, 1, 1], [], []>} : vector<8x128xbf16>, vector<128x64xbf16>, vector<8x64xf32> -> vector<8x64xf32>
      %213 = arith.truncf %209 : vector<8x128xf32> to vector<8x128xbf16>
      %c0_73 = arith.constant 0 : index
      %c0_74 = arith.constant 0 : index
      %214 = vector.load %arg9[%c0_73, %c0_74] : memref<128x64xbf16, #tpu.memory_space<vmem>>, vector<128x64xbf16>
      %cst_75 = arith.constant dense<0.000000e+00> : vector<8x64xf32>
      %215 = tpu.matmul %213, %214, %cst_75 {dimension_numbers = #tpu.dot_dimension_numbers<[1], [0], [0], [1], [0, 0, 1, 1], [], []>} : vector<8x128xbf16>, vector<128x64xbf16>, vector<8x64xf32> -> vector<8x64xf32>
      %216 = arith.addf %212, %215 : vector<8x64xf32>
      %c0_76 = arith.constant 0 : index
      %c0_77 = arith.constant 0 : index
      %217 = vector.load %arg10[%c0_76, %c0_77] : memref<1x64xf32, #tpu.memory_space<vmem>>, vector<1x64xf32>
      %218 = vector.broadcast %217 : vector<1x64xf32> to vector<8x64xf32>
      %219 = arith.addf %216, %218 : vector<8x64xf32>
      %cst_78 = arith.constant 0.000000e+00 : f32
      %220 = vector.broadcast %cst_78 : f32 to vector<8x64xf32>
      %221 = arith.maximumf %219, %220 : vector<8x64xf32>
      %c0_79 = arith.constant 0 : index
      %c0_80 = arith.constant 0 : index
      %222 = vector.load %arg11[%c0_79, %c0_80] : memref<1x64xf32, #tpu.memory_space<vmem>>, vector<1x64xf32>
      %223 = vector.broadcast %222 : vector<1x64xf32> to vector<8x64xf32>
      %224 = arith.mulf %221, %223 : vector<8x64xf32>
      %cst_81 = arith.constant dense<0.000000e+00> : vector<8xf32>
      %225 = vector.multi_reduction <add>, %224, %cst_81 [1] : vector<8x64xf32> to vector<8xf32>
      %226 = vector.shape_cast %225 : vector<8xf32> to vector<8x1xf32>
      %c0_82 = arith.constant 0 : index
      %c0_83 = arith.constant 0 : index
      %227 = vector.load %arg12[%c0_82, %c0_83] : memref<1x1xf32, #tpu.memory_space<vmem>>, vector<1x1xf32>
      %228 = vector.broadcast %227 : vector<1x1xf32> to vector<8x1xf32>
      %229 = arith.addf %226, %228 : vector<8x1xf32>
      %230 = arith.negf %229 : vector<8x1xf32>
      %231 = math.exp %230 : vector<8x1xf32>
      %cst_84 = arith.constant 1.000000e+00 : f32
      %232 = vector.broadcast %cst_84 : f32 to vector<8x1xf32>
      %233 = arith.addf %232, %231 : vector<8x1xf32>
      %234 = arith.divf %232, %233 : vector<8x1xf32>
      %235 = vector.shape_cast %234 : vector<8x1xf32> to vector<8x1xf32>
      %236 = vector.broadcast %235 : vector<8x1xf32> to vector<8x128xf32>
      %c0_85 = arith.constant 0 : index
      %c0_86 = arith.constant 0 : index
      %237 = vector.load %arg13[%c0_85, %c0_86] : memref<8x128xf32, #tpu.memory_space<vmem>>, vector<8x128xf32>
      tpu.vector_store %arg13[%c0_85, %c0_86], %236 {strides = array<i32>} : memref<8x128xf32, #tpu.memory_space<vmem>>, vector<8x128xf32>,
    } else {
    }
    return
  }
  func.func @transform_0(%arg0: i32, %arg1: i32) -> (i32, i32, i32) {
    %c0_i32 = arith.constant 0 : i32
    %c0_i32_0 = arith.constant 0 : i32
    return %arg0, %arg1, %c0_i32 : i32, i32, i32
  }
  func.func @transform_1(%arg0: i32, %arg1: i32) -> (i32, i32) {
    %c0_i32 = arith.constant 0 : i32
    %c0_i32_0 = arith.constant 0 : i32
    %c0_i32_1 = arith.constant 0 : i32
    return %c0_i32, %c0_i32_0 : i32, i32
  }
  func.func @transform_2(%arg0: i32, %arg1: i32) -> (i32, i32) {
    %c0_i32 = arith.constant 0 : i32
    %c0_i32_0 = arith.constant 0 : i32
    %c0_i32_1 = arith.constant 0 : i32
    return %c0_i32, %c0_i32_0 : i32, i32
  }
  func.func @transform_3(%arg0: i32, %arg1: i32) -> (i32, i32) {
    %c0_i32 = arith.constant 0 : i32
    %c0_i32_0 = arith.constant 0 : i32
    %c0_i32_1 = arith.constant 0 : i32
    return %c0_i32, %c0_i32_0 : i32, i32
  }
  func.func @transform_4(%arg0: i32, %arg1: i32) -> (i32, i32) {
    %c0_i32 = arith.constant 0 : i32
    %c0_i32_0 = arith.constant 0 : i32
    %c0_i32_1 = arith.constant 0 : i32
    return %c0_i32, %c0_i32_0 : i32, i32
  }
  func.func @transform_5(%arg0: i32, %arg1: i32) -> (i32, i32) {
    %c0_i32 = arith.constant 0 : i32
    %c0_i32_0 = arith.constant 0 : i32
    %c0_i32_1 = arith.constant 0 : i32
    return %c0_i32, %c0_i32_0 : i32, i32
  }
  func.func @transform_6(%arg0: i32, %arg1: i32) -> (i32, i32) {
    %c0_i32 = arith.constant 0 : i32
    %c0_i32_0 = arith.constant 0 : i32
    %c0_i32_1 = arith.constant 0 : i32
    return %c0_i32, %c0_i32_0 : i32, i32
  }
  func.func @transform_7(%arg0: i32, %arg1: i32) -> (i32, i32) {
    %c0_i32 = arith.constant 0 : i32
    %c0_i32_0 = arith.constant 0 : i32
    %c0_i32_1 = arith.constant 0 : i32
    return %c0_i32, %c0_i32_0 : i32, i32
  }
  func.func @transform_8(%arg0: i32, %arg1: i32) -> (i32, i32) {
    %c0_i32 = arith.constant 0 : i32
    %c0_i32_0 = arith.constant 0 : i32
    %c0_i32_1 = arith.constant 0 : i32
    return %c0_i32, %c0_i32_0 : i32, i32
  }
  func.func @transform_9(%arg0: i32, %arg1: i32) -> (i32, i32) {
    %c0_i32 = arith.constant 0 : i32
    %c0_i32_0 = arith.constant 0 : i32
    %c0_i32_1 = arith.constant 0 : i32
    return %c0_i32, %c0_i32_0 : i32, i32
  }
  func.func @transform_10(%arg0: i32, %arg1: i32) -> (i32, i32) {
    %c0_i32 = arith.constant 0 : i32
    %c0_i32_0 = arith.constant 0 : i32
    %c0_i32_1 = arith.constant 0 : i32
    return %c0_i32, %c0_i32_0 : i32, i32
  }
  func.func @transform_11(%arg0: i32, %arg1: i32) -> (i32, i32) {
    %c0_i32 = arith.constant 0 : i32
    %c0_i32_0 = arith.constant 0 : i32
    return %arg0, %c0_i32 : i32, i32
  }
}

</mosaic_0001>

<llo_original>
// kernel: tpu_custom_call.1
$region0: #{tpu_custom_call.1}
  #allocation0 [shape = 'u32[]', space=smem, size = 0x4, offset = 0x4, fixed_abs, tag = 'smem constant byte address 0x4 - core index']
  #allocation1 [shape = 'u32[72,128]{1,0:T(1,128)}', space=vmem, size = 0x9000, scoped, tag = 'internal scratch']
  #allocation2 [shape = 'f32[8,128]{1,0:T(8,128)}', space=vmem, size = 0x1000, scoped, tag = 'scratch operand']
  #allocation3 [shape = 'f32[8,128]{1,0:T(8,128)}', space=vmem, size = 0x1000, scoped, tag = 'scratch operand']
  #allocation4 [shape = 'f32[64,512]{1,0:T(8,128)}', space=vmem, size = 0x20000, scoped, tag = 'scratch operand']
  #allocation5 [shape = 'f32[1,1]{1,0:T(1,128)S(1)}', space=vmem, size = 0x200, scoped, tag = 'scoped memory for tpu_custom_call.1']
  %s0 = inlined_call_operand.vmem [shape: bf16[1,64,64], index: 0, kind: input, shape index: {}]
  %s1 = inlined_call_operand.vmem [shape: bf16[64,512], index: 1, kind: input, shape index: {}]
  %s2 = inlined_call_operand.hbm [shape: bf16[128,512], index: 2, kind: input, shape index: {}]
  %s3 = inlined_call_operand.vmem [shape: f32[1,512], index: 3, kind: input, shape index: {}]
  %s4 = inlined_call_operand.hbm [shape: bf16[64,512], index: 4, kind: input, shape index: {}]
  %s5 = inlined_call_operand.hbm [shape: f32[1,512], index: 5, kind: input, shape index: {}]
  %s6 = inlined_call_operand.vmem [shape: bf16[128,64], index: 6, kind: input, shape index: {}]
  %s7 = inlined_call_operand.vmem [shape: bf16[128,64], index: 7, kind: input, shape index: {}]
  %s8 = inlined_call_operand.vmem [shape: f32[1,64], index: 8, kind: input, shape index: {}]
  %s9 = inlined_call_operand.vmem [shape: f32[1,64], index: 9, kind: input, shape index: {}]
  %s10 = inlined_call_operand.<no memory space> [shape: f32[1,1], index: 10, kind: input, shape index: {}]
  %s11 = inlined_call_operand.hbm [shape: f32[8,128], index: 11, kind: output, shape index: {}]
  %s12 = sld [smem:[#allocation0]]
  $region74: #{tpu_custom_call.1} parent=0
    _
  %s14 = ssub.s32 1, %s12
  %s15 = scalar_select 0, %s14, %s12
  %v16 = vstv %s10
  %17 = vst [vmem:[#allocation5] sm:$0x1] %v16
  $region1: #{tpu_custom_call.1} parent=0
    #allocation6 [shape = 'u8[131072]{0}', space=vmem, size = 0x20000, scoped, tag = 'input window, operand 2, single buffered']
    #allocation7 [shape = 's32[1]{0}', space=sflag, size = 0x4, scoped, tag = 'scoped memory for tpu_custom_call.1']
    #allocation8 [shape = 's32[1]{0}', space=sflag, size = 0x4, scoped, tag = 'scoped memory for tpu_custom_call.1']
    #allocation9 [shape = 'u8[65536]{0}', space=vmem, size = 0x10000, scoped, tag = 'input window, operand 4, single buffered']
    #allocation10 [shape = 's32[1]{0}', space=sflag, size = 0x4, scoped, tag = 'scoped memory for tpu_custom_call.1']
    #allocation11 [shape = 'u8[2048]{0}', space=vmem, size = 0x800, scoped, tag = 'input window, operand 5, single buffered']
    #allocation12 [shape = 'u8[4096]{0}', space=vmem, size = 0x1000, scoped, tag = 'output window, operand 0, single buffered']
    %18 = vsyncpa [#allocation7], 0
    %19 = vsyncpa [#allocation10], 0
    %20 = vsyncpa [#allocation8], 0
    // Predicated region
    $region2: #{tpu_custom_call.1} parent=1 // pred_check
      _
    $region3: #{tpu_custom_call.1} parent=1 // pred_check_branch
      %22 = sbr.rel (0) target = $region5
    $region4: #{tpu_custom_call.1} parent=1 // pred_region
      _
    $region5: #{tpu_custom_call.1} parent=1 // pred_fallthru
      _
    // Predicated region
    $region6: #{tpu_custom_call.1} parent=1 // pred_check
      _
    $region7: #{tpu_custom_call.1} parent=1 // pred_check_branch
      %24 = sbr.rel (0) target = $region9
    $region8: #{tpu_custom_call.1} parent=1 // pred_region
      _
    $region9: #{tpu_custom_call.1} parent=1 // pred_fallthru
      _
    // Predicated region
    $region10: #{tpu_custom_call.1} parent=1 // pred_check
      _
    $region11: #{tpu_custom_call.1} parent=1 // pred_check_branch
      %26 = sbr.rel (0) target = $region13
    $region12: #{tpu_custom_call.1} parent=1 // pred_region
      %28 = vsyncadd [#allocation7], 0
      %s29 = sshll.u32 %s2, 4
      %s30 = int_to_ptr.hbm [resolvable:$true] %s29
      %s31 = sshll.u32 [#allocation6], 4
      %s32 = int_to_ptr.vmem [resolvable:$true] %s31
      %37 = dma.hbm_to_vmem [thread:$0]  %s30, 4096, %s32, [#allocation7], 256, 256, 16
    $region13: #{tpu_custom_call.1} parent=1 // pred_fallthru
      _
    // Predicated region
    $region14: #{tpu_custom_call.1} parent=1 // pred_check
      _
    $region15: #{tpu_custom_call.1} parent=1 // pred_check_branch
      %39 = sbr.rel (0) target = $region17
    $region16: #{tpu_custom_call.1} parent=1 // pred_region
      _
    $region17: #{tpu_custom_call.1} parent=1 // pred_fallthru
      _
    // Predicated region
    $region18: #{tpu_custom_call.1} parent=1 // pred_check
      _
    $region19: #{tpu_custom_call.1} parent=1 // pred_check_branch
      %41 = sbr.rel (0) target = $region21
    $region20: #{tpu_custom_call.1} parent=1 // pred_region
      %43 = vsyncadd [#allocation10], 0
      %s44 = sshll.u32 %s4, 4
      %s45 = int_to_ptr.hbm [resolvable:$true] %s44
      %s46 = sshll.u32 [#allocation9], 4
      %s47 = int_to_ptr.vmem [resolvable:$true] %s46
      %52 = dma.hbm_to_vmem [thread:$0]  %s45, 2048, %s47, [#allocation10], 256, 256, 16
    $region21: #{tpu_custom_call.1} parent=1 // pred_fallthru
      _
    // Predicated region
    $region22: #{tpu_custom_call.1} parent=1 // pred_check
      _
    $region23: #{tpu_custom_call.1} parent=1 // pred_check_branch
      %54 = sbr.rel (0) target = $region25
    $region24: #{tpu_custom_call.1} parent=1 // pred_region
      %56 = vsyncadd [#allocation10], 0
      %s58 = sshll.u32 %s5, 4
      %s59 = int_to_ptr.hbm [resolvable:$true] %s58
      %s60 = sshll.u32 [#allocation11], 4
      %s61 = int_to_ptr.vmem [resolvable:$true] %s60
      %63 = dma.hbm_to_vmem [thread:$0]  %s59, 64, %s61, [#allocation10]
    $region25: #{tpu_custom_call.1} parent=1 // pred_fallthru
      _
    // Predicated region
    $region26: #{tpu_custom_call.1} parent=1 // pred_check
      _
    $region27: #{tpu_custom_call.1} parent=1 // pred_check_branch
      %65 = sbr.rel (0) target = $region29
    $region28: #{tpu_custom_call.1} parent=1 // pred_region
      _
    $region29: #{tpu_custom_call.1} parent=1 // pred_fallthru
      _
    // Predicated region
    $region30: #{tpu_custom_call.1} parent=1 // pred_check
      _
    $region31: #{tpu_custom_call.1} parent=1 // pred_check_branch
      %67 = sbr.rel (0) target = $region33
    $region32: #{tpu_custom_call.1} parent=1 // pred_region
      _
    $region33: #{tpu_custom_call.1} parent=1 // pred_fallthru
      _
    // Predicated region
    $region34: #{tpu_custom_call.1} parent=1 // pred_check
      _
    $region35: #{tpu_custom_call.1} parent=1 // pred_check_branch
      %69 = sbr.rel (0) target = $region37
    $region36: #{tpu_custom_call.1} parent=1 // pred_region
      _
    $region37: #{tpu_custom_call.1} parent=1 // pred_fallthru
      _
    // Predicated region
    $region38: #{tpu_custom_call.1} parent=1 // pred_check
      _
    $region39: #{tpu_custom_call.1} parent=1 // pred_check_branch
      %71 = sbr.rel (0) target = $region41
    $region40: #{tpu_custom_call.1} parent=1 // pred_region
      _
    $region41: #{tpu_custom_call.1} parent=1 // pred_fallthru
      _
    // Predicated region
    $region42: #{tpu_custom_call.1} parent=1 // pred_check
      _
    $region43: #{tpu_custom_call.1} parent=1 // pred_check_branch
      %73 = sbr.rel (0) target = $region45
    $region44: #{tpu_custom_call.1} parent=1 // pred_region
      _
    $region45: #{tpu_custom_call.1} parent=1 // pred_fallthru
      _
    // Predicated region
    $region46: #{tpu_custom_call.1} parent=1 // pred_check
      _
    $region47: #{tpu_custom_call.1} parent=1 // pred_check_branch
      %75 = sbr.rel (0) target = $region49
    $region48: #{tpu_custom_call.1} parent=1 // pred_region
      %77 = dma.done [#allocation7], 4096
    $region49: #{tpu_custom_call.1} parent=1 // pred_fallthru
      _
    // Predicated region
    $region50: #{tpu_custom_call.1} parent=1 // pred_check
      _
    $region51: #{tpu_custom_call.1} parent=1 // pred_check_branch
      %79 = sbr.rel (0) target = $region53
    $region52: #{tpu_custom_call.1} parent=1 // pred_region
      %81 = dma.done [#allocation10], 2048
    $region53: #{tpu_custom_call.1} parent=1 // pred_fallthru
      _
    // Predicated region
    $region54: #{tpu_custom_call.1} parent=1 // pred_check
      _
    $region55: #{tpu_custom_call.1} parent=1 // pred_check_branch
      %83 = sbr.rel (0) target = $region57
    $region56: #{tpu_custom_call.1} parent=1 // pred_region
      %85 = dma.done [#allocation10], 64
    $region57: #{tpu_custom_call.1} parent=1 // pred_fallthru
      _
    %p87 = scmp.eq.s32.totalorder 0, 0
    // Predicated region
    $region58: #{tpu_custom_call.1} parent=1 // pred_check
      %p88 = pneg %p87
    $region59: #{tpu_custom_call.1} parent=1 // pred_check_branch
      %90 = sbr.rel (%p88) target = $region61
    $region60: #{tpu_custom_call.1} parent=1 // pred_region
      %91 = vst [vmem:[#allocation2] sm:$0xff] 0.0
      %92 = vst [vmem:[#allocation3] sm:$0xff] 0.0
    $region61: #{tpu_custom_call.1} parent=1 // pred_fallthru
      _
    %v93 = vld [vmem:[%s0] sm:$0xf]
    %v94 = vld [vmem:[%s0 + $0x4] sm:$0xf]
    %v95 = vld [vmem:[%s0 + $0x8] sm:$0xf]
    %v96 = vld [vmem:[%s0 + $0xc] sm:$0xf]
    %v97 = vld [vmem:[%s0 + $0x10] sm:$0xf]
    %v98 = vld [vmem:[%s0 + $0x14] sm:$0xf]
    %v99 = vld [vmem:[%s0 + $0x18] sm:$0xf]
    %v100 = vld [vmem:[%s0 + $0x1c] sm:$0xf]
    %v101 = vld [vmem:[%s1] sm:$0xff]
    %v102 = vld [vmem:[%s1 + $0x8] sm:$0xff]
    %v103 = vld [vmem:[%s1 + $0x10] sm:$0xff]
    %v104 = vld [vmem:[%s1 + $0x18] sm:$0xff]
    %v105 = vld [vmem:[%s1 + $0x20] sm:$0xff]
    %v106 = vld [vmem:[%s1 + $0x28] sm:$0xff]
    %v107 = vld [vmem:[%s1 + $0x30] sm:$0xff]
    %v108 = vld [vmem:[%s1 + $0x38] sm:$0xff]
    %v109 = vld [vmem:[%s1 + $0x40] sm:$0xff]
    %v110 = vld [vmem:[%s1 + $0x48] sm:$0xff]
    %v111 = vld [vmem:[%s1 + $0x50] sm:$0xff]
    %v112 = vld [vmem:[%s1 + $0x58] sm:$0xff]
    %v113 = vld [vmem:[%s1 + $0x60] sm:$0xff]
    %v114 = vld [vmem:[%s1 + $0x68] sm:$0xff]
    %v115 = vld [vmem:[%s1 + $0x70] sm:$0xff]
    %v116 = vld [vmem:[%s1 + $0x78] sm:$0xff]
    %v117 = vld [vmem:[%s3] sm:$0xf]
    %v119 = vperm.slane %v117, 0
    %v120 = vperm.slane %v117, 1
    %v121 = vperm.slane %v117, 2
    %v122 = vperm.slane %v117, 3
    %v135 = vunpack.c.l.b16 %v93
    %v136 = vunpack.c.l.b16 %v94
    %v137 = vunpack.c.l.b16 %v95
    %v138 = vunpack.c.l.b16 %v96
    %v139 = vunpack.c.l.b16 %v97
    %v140 = vunpack.c.l.b16 %v98
    %v141 = vunpack.c.l.b16 %v99
    %v142 = vunpack.c.l.b16 %v100
    %v143 = vpack.c.b16 %v136, %v135
    %v144 = vpack.c.b16 %v138, %v137
    %v145 = vpack.c.b16 %v140, %v139
    %v146 = vpack.c.b16 %v142, %v141
    %v163 = vunpack.c.l.b16 %v101
    %v164 = vunpack.c.h.b16 %v101
    %v165 = vunpack.c.l.b16 %v102
    %v166 = vunpack.c.h.b16 %v102
    %v167 = vunpack.c.l.b16 %v103
    %v168 = vunpack.c.h.b16 %v103
    %v169 = vunpack.c.l.b16 %v104
    %v170 = vunpack.c.h.b16 %v104
    %v171 = vunpack.c.l.b16 %v105
    %v172 = vunpack.c.h.b16 %v105
    %v173 = vunpack.c.l.b16 %v106
    %v174 = vunpack.c.h.b16 %v106
    %v175 = vunpack.c.l.b16 %v107
    %v176 = vunpack.c.h.b16 %v107
    %v177 = vunpack.c.l.b16 %v108
    %v178 = vunpack.c.h.b16 %v108
    %v179 = vunpack.c.l.b16 %v109
    %v180 = vunpack.c.h.b16 %v109
    %v181 = vunpack.c.l.b16 %v110
    %v182 = vunpack.c.h.b16 %v110
    %v183 = vunpack.c.l.b16 %v111
    %v184 = vunpack.c.h.b16 %v111
    %v185 = vunpack.c.l.b16 %v112
    %v186 = vunpack.c.h.b16 %v112
    %v187 = vunpack.c.l.b16 %v113
    %v188 = vunpack.c.h.b16 %v113
    %v189 = vunpack.c.l.b16 %v114
    %v190 = vunpack.c.h.b16 %v114
    %v191 = vunpack.c.l.b16 %v115
    %v192 = vunpack.c.h.b16 %v115
    %v193 = vunpack.c.l.b16 %v116
    %v194 = vunpack.c.h.b16 %v116
    %v195 = vpack.c.b16 %v167, %v163
    %v196 = vpack.c.b16 %v168, %v164
    %v197 = vpack.c.b16 %v169, %v165
    %v198 = vpack.c.b16 %v170, %v166
    %v199 = vpack.c.b16 %v175, %v171
    %v200 = vpack.c.b16 %v176, %v172
    %v201 = vpack.c.b16 %v177, %v173
    %v202 = vpack.c.b16 %v178, %v174
    %v203 = vpack.c.b16 %v183, %v179
    %v204 = vpack.c.b16 %v184, %v180
    %v205 = vpack.c.b16 %v185, %v181
    %v206 = vpack.c.b16 %v186, %v182
    %v207 = vpack.c.b16 %v191, %v187
    %v208 = vpack.c.b16 %v192, %v188
    %v209 = vpack.c.b16 %v193, %v189
    %v210 = vpack.c.b16 %v194, %v190
    %vm227 = vcmask 523264
    %v229 = vsel %vm227, %v143, 0
    %v232 = vsel %vm227, %v144, 0
    %v235 = vsel %vm227, %v145, 0
    %v238 = vsel %vm227, %v146, 0
    %240 = vmatpush.bf16.msra.mxu0 0
    %241 = vmatpush.bf16.msra.mxu0 0
    %242 = vmatpush.bf16.msra.mxu0 0
    %243 = vmatpush.bf16.msra.mxu0 0
    %244 = vmatpush.bf16.msra.mxu0 %v207
    %245 = vmatpush.bf16.msra.mxu0 %v203
    %246 = vmatpush.bf16.msra.mxu0 %v199
    %247 = vmatpush.bf16.msra.mxu0 %v195
    %248 = vmatmul.bf16.gmra.mxu0 %v229
    %v249 = vpop.f32.mrf.mxu0
    %v250 = vadd.f32 %v119, %v249
    %v251 = vpop.f32.mrf.mxu0
    %v252 = vadd.f32 %v119, %v251
    %253 = vmatmul.bf16.gmra.mxu0 %v232
    %v254 = vpop.f32.mrf.mxu0
    %v255 = vadd.f32 %v119, %v254
    %v256 = vpop.f32.mrf.mxu0
    %v257 = vadd.f32 %v119, %v256
    %258 = vmatmul.bf16.gmra.mxu0 %v235
    %v259 = vpop.f32.mrf.mxu0
    %v260 = vadd.f32 %v119, %v259
    %v261 = vpop.f32.mrf.mxu0
    %v262 = vadd.f32 %v119, %v261
    %263 = vmatmul.bf16.gmra.mxu0 %v238
    %v264 = vpop.f32.mrf.mxu0
    %v265 = vadd.f32 %v119, %v264
    %v266 = vpop.f32.mrf.mxu0
    %v267 = vadd.f32 %v119, %v266
    %268 = vdwg.mxu0
    %269 = vmatpush.bf16.msra.mxu0 0
    %270 = vmatpush.bf16.msra.mxu0 0
    %271 = vmatpush.bf16.msra.mxu0 0
    %272 = vmatpush.bf16.msra.mxu0 0
    %273 = vmatpush.bf16.msra.mxu0 %v208
    %274 = vmatpush.bf16.msra.mxu0 %v204
    %275 = vmatpush.bf16.msra.mxu0 %v200
    %276 = vmatpush.bf16.msra.mxu0 %v196
    %277 = vmatmul.bf16.gmra.mxu0 %v229
    %v278 = vpop.f32.mrf.mxu0
    %v279 = vadd.f32 %v120, %v278
    %v280 = vpop.f32.mrf.mxu0
    %v281 = vadd.f32 %v120, %v280
    %282 = vmatmul.bf16.gmra.mxu0 %v232
    %v283 = vpop.f32.mrf.mxu0
    %v284 = vadd.f32 %v120, %v283
    %v285 = vpop.f32.mrf.mxu0
    %v286 = vadd.f32 %v120, %v285
    %287 = vmatmul.bf16.gmra.mxu0 %v235
    %v288 = vpop.f32.mrf.mxu0
    %v289 = vadd.f32 %v120, %v288
    %v290 = vpop.f32.mrf.mxu0
    %v291 = vadd.f32 %v120, %v290
    %292 = vmatmul.bf16.gmra.mxu0 %v238
    %v293 = vpop.f32.mrf.mxu0
    %v294 = vadd.f32 %v120, %v293
    %v295 = vpop.f32.mrf.mxu0
    %v296 = vadd.f32 %v120, %v295
    %297 = vdwg.mxu0
    %298 = vmatpush.bf16.msra.mxu0 0
    %299 = vmatpush.bf16.msra.mxu0 0
    %300 = vmatpush.bf16.msra.mxu0 0
    %301 = vmatpush.bf16.msra.mxu0 0
    %302 = vmatpush.bf16.msra.mxu0 %v209
    %303 = vmatpush.bf16.msra.mxu0 %v205
    %304 = vmatpush.bf16.msra.mxu0 %v201
    %305 = vmatpush.bf16.msra.mxu0 %v197
    %306 = vmatmul.bf16.gmra.mxu0 %v229
    %v307 = vpop.f32.mrf.mxu0
    %v308 = vadd.f32 %v121, %v307
    %v309 = vpop.f32.mrf.mxu0
    %v310 = vadd.f32 %v121, %v309
    %311 = vmatmul.bf16.gmra.mxu0 %v232
    %v312 = vpop.f32.mrf.mxu0
    %v313 = vadd.f32 %v121, %v312
    %v314 = vpop.f32.mrf.mxu0
    %v315 = vadd.f32 %v121, %v314
    %316 = vmatmul.bf16.gmra.mxu0 %v235
    %v317 = vpop.f32.mrf.mxu0
    %v318 = vadd.f32 %v121, %v317
    %v319 = vpop.f32.mrf.mxu0
    %v320 = vadd.f32 %v121, %v319
    %321 = vmatmul.bf16.gmra.mxu0 %v238
    %v322 = vpop.f32.mrf.mxu0
    %v323 = vadd.f32 %v121, %v322
    %v324 = vpop.f32.mrf.mxu0
    %v325 = vadd.f32 %v121, %v324
    %326 = vdwg.mxu0
    %327 = vmatpush.bf16.msra.mxu0 0
    %328 = vmatpush.bf16.msra.mxu0 0
    %329 = vmatpush.bf16.msra.mxu0 0
    %330 = vmatpush.bf16.msra.mxu0 0
    %331 = vmatpush.bf16.msra.mxu0 %v210
    %332 = vmatpush.bf16.msra.mxu0 %v206
    %333 = vmatpush.bf16.msra.mxu0 %v202
    %334 = vmatpush.bf16.msra.mxu0 %v198
    %335 = vmatmul.bf16.gmra.mxu0 %v229
    %v336 = vpop.f32.mrf.mxu0
    %v337 = vadd.f32 %v122, %v336
    %v338 = vpop.f32.mrf.mxu0
    %v339 = vadd.f32 %v122, %v338
    %340 = vmatmul.bf16.gmra.mxu0 %v232
    %v341 = vpop.f32.mrf.mxu0
    %v342 = vadd.f32 %v122, %v341
    %v343 = vpop.f32.mrf.mxu0
    %v344 = vadd.f32 %v122, %v343
    %345 = vmatmul.bf16.gmra.mxu0 %v235
    %v346 = vpop.f32.mrf.mxu0
    %v347 = vadd.f32 %v122, %v346
    %v348 = vpop.f32.mrf.mxu0
    %v349 = vadd.f32 %v122, %v348
    %350 = vmatmul.bf16.gmra.mxu0 %v238
    %v351 = vpop.f32.mrf.mxu0
    %v352 = vadd.f32 %v122, %v351
    %v353 = vpop.f32.mrf.mxu0
    %v354 = vadd.f32 %v122, %v353
    %355 = vdwg.mxu0
    %356 = vst [vmem:[#allocation4] sm:$0xff] %v250
    %357 = vst [vmem:[#allocation4 + $0x8] sm:$0xff] %v279
    %358 = vst [vmem:[#allocation4 + $0x10] sm:$0xff] %v308
    %359 = vst [vmem:[#allocation4 + $0x18] sm:$0xff] %v337
    %360 = vst [vmem:[#allocation4 + $0x20] sm:$0xff] %v252
    %361 = vst [vmem:[#allocation4 + $0x28] sm:$0xff] %v281
    %362 = vst [vmem:[#allocation4 + $0x30] sm:$0xff] %v310
    %363 = vst [vmem:[#allocation4 + $0x38] sm:$0xff] %v339
    %364 = vst [vmem:[#allocation4 + $0x40] sm:$0xff] %v255
    %365 = vst [vmem:[#allocation4 + $0x48] sm:$0xff] %v284
    %366 = vst [vmem:[#allocation4 + $0x50] sm:$0xff] %v313
    %367 = vst [vmem:[#allocation4 + $0x58] sm:$0xff] %v342
    %368 = vst [vmem:[#allocation4 + $0x60] sm:$0xff] %v257
    %369 = vst [vmem:[#allocation4 + $0x68] sm:$0xff] %v286
    %370 = vst [vmem:[#allocation4 + $0x70] sm:$0xff] %v315
    %371 = vst [vmem:[#allocation4 + $0x78] sm:$0xff] %v344
    %372 = vst [vmem:[#allocation4 + $0x80] sm:$0xff] %v260
    %373 = vst [vmem:[#allocation4 + $0x88] sm:$0xff] %v289
    %374 = vst [vmem:[#allocation4 + $0x90] sm:$0xff] %v318
    %375 = vst [vmem:[#allocation4 + $0x98] sm:$0xff] %v347
    %376 = vst [vmem:[#allocation4 + $0xa0] sm:$0xff] %v262
    %377 = vst [vmem:[#allocation4 + $0xa8] sm:$0xff] %v291
    %378 = vst [vmem:[#allocation4 + $0xb0] sm:$0xff] %v320
    %379 = vst [vmem:[#allocation4 + $0xb8] sm:$0xff] %v349
    %380 = vst [vmem:[#allocation4 + $0xc0] sm:$0xff] %v265
    %381 = vst [vmem:[#allocation4 + $0xc8] sm:$0xff] %v294
    %382 = vst [vmem:[#allocation4 + $0xd0] sm:$0xff] %v323
    %383 = vst [vmem:[#allocation4 + $0xd8] sm:$0xff] %v352
    %384 = vst [vmem:[#allocation4 + $0xe0] sm:$0xff] %v267
    %385 = vst [vmem:[#allocation4 + $0xe8] sm:$0xff] %v296
    %386 = vst [vmem:[#allocation4 + $0xf0] sm:$0xff] %v325
    %387 = vst [vmem:[#allocation4 + $0xf8] sm:$0xff] %v354
    %v388 = vld [vmem:[#allocation2] sm:$0xff]
    %v389 = vld [vmem:[#allocation3] sm:$0xff]
    %v390 = vld [vmem:[#allocation4] sm:$0xff]
    %v391 = vld [vmem:[#allocation4 + $0x8] sm:$0xff]
    %v392 = vld [vmem:[#allocation4 + $0x10] sm:$0xff]
    %v393 = vld [vmem:[#allocation4 + $0x18] sm:$0xff]
    %v394 = vpack.c.bf16 %v388, %v388
    %v395 = vld [vmem:[#allocation6] sm:$0xff]
    %v396 = vld [vmem:[#allocation6 + $0x8] sm:$0xff]
    %v397 = vld [vmem:[#allocation6 + $0x10] sm:$0xff]
    %v398 = vld [vmem:[#allocation6 + $0x18] sm:$0xff]
    %v399 = vld [vmem:[#allocation6 + $0x20] sm:$0xff]
    %v400 = vld [vmem:[#allocation6 + $0x28] sm:$0xff]
    %v401 = vld [vmem:[#allocation6 + $0x30] sm:$0xff]
    %v402 = vld [vmem:[#allocation6 + $0x38] sm:$0xff]
    %v403 = vld [vmem:[#allocation6 + $0x40] sm:$0xff]
    %v404 = vld [vmem:[#allocation6 + $0x48] sm:$0xff]
    %v405 = vld [vmem:[#allocation6 + $0x50] sm:$0xff]
    %v406 = vld [vmem:[#allocation6 + $0x58] sm:$0xff]
    %v407 = vld [vmem:[#allocation6 + $0x60] sm:$0xff]
    %v408 = vld [vmem:[#allocation6 + $0x68] sm:$0xff]
    %v409 = vld [vmem:[#allocation6 + $0x70] sm:$0xff]
    %v410 = vld [vmem:[#allocation6 + $0x78] sm:$0xff]
    %v411 = vld [vmem:[#allocation6 + $0x80] sm:$0xff]
    %v412 = vld [vmem:[#allocation6 + $0x88] sm:$0xff]
    %v413 = vld [vmem:[#allocation6 + $0x90] sm:$0xff]
    %v414 = vld [vmem:[#allocation6 + $0x98] sm:$0xff]
    %v415 = vld [vmem:[#allocation6 + $0xa0] sm:$0xff]
    %v416 = vld [vmem:[#allocation6 + $0xa8] sm:$0xff]
    %v417 = vld [vmem:[#allocation6 + $0xb0] sm:$0xff]
    %v418 = vld [vmem:[#allocation6 + $0xb8] sm:$0xff]
    %v419 = vld [vmem:[#allocation6 + $0xc0] sm:$0xff]
    %v420 = vld [vmem:[#allocation6 + $0xc8] sm:$0xff]
    %v421 = vld [vmem:[#allocation6 + $0xd0] sm:$0xff]
    %v422 = vld [vmem:[#allocation6 + $0xd8] sm:$0xff]
    %v423 = vld [vmem:[#allocation6 + $0xe0] sm:$0xff]
    %v424 = vld [vmem:[#allocation6 + $0xe8] sm:$0xff]
    %v425 = vld [vmem:[#allocation6 + $0xf0] sm:$0xff]
    %v426 = vld [vmem:[#allocation6 + $0xf8] sm:$0xff]
    %v459 = vunpack.c.l.b16 %v395
    %v460 = vunpack.c.h.b16 %v395
    %v461 = vunpack.c.l.b16 %v396
    %v462 = vunpack.c.h.b16 %v396
    %v463 = vunpack.c.l.b16 %v397
    %v464 = vunpack.c.h.b16 %v397
    %v465 = vunpack.c.l.b16 %v398
    %v466 = vunpack.c.h.b16 %v398
    %v467 = vunpack.c.l.b16 %v399
    %v468 = vunpack.c.h.b16 %v399
    %v469 = vunpack.c.l.b16 %v400
    %v470 = vunpack.c.h.b16 %v400
    %v471 = vunpack.c.l.b16 %v401
    %v472 = vunpack.c.h.b16 %v401
    %v473 = vunpack.c.l.b16 %v402
    %v474 = vunpack.c.h.b16 %v402
    %v475 = vunpack.c.l.b16 %v403
    %v476 = vunpack.c.h.b16 %v403
    %v477 = vunpack.c.l.b16 %v404
    %v478 = vunpack.c.h.b16 %v404
    %v479 = vunpack.c.l.b16 %v405
    %v480 = vunpack.c.h.b16 %v405
    %v481 = vunpack.c.l.b16 %v406
    %v482 = vunpack.c.h.b16 %v406
    %v483 = vunpack.c.l.b16 %v407
    %v484 = vunpack.c.h.b16 %v407
    %v485 = vunpack.c.l.b16 %v408
    %v486 = vunpack.c.h.b16 %v408
    %v487 = vunpack.c.l.b16 %v409
    %v488 = vunpack.c.h.b16 %v409
    %v489 = vunpack.c.l.b16 %v410
    %v490 = vunpack.c.h.b16 %v410
    %v491 = vunpack.c.l.b16 %v411
    %v492 = vunpack.c.h.b16 %v411
    %v493 = vunpack.c.l.b16 %v412
    %v494 = vunpack.c.h.b16 %v412
    %v495 = vunpack.c.l.b16 %v413
    %v496 = vunpack.c.h.b16 %v413
    %v497 = vunpack.c.l.b16 %v414
    %v498 = vunpack.c.h.b16 %v414
    %v499 = vunpack.c.l.b16 %v415
    %v500 = vunpack.c.h.b16 %v415
    %v501 = vunpack.c.l.b16 %v416
    %v502 = vunpack.c.h.b16 %v416
    %v503 = vunpack.c.l.b16 %v417
    %v504 = vunpack.c.h.b16 %v417
    %v505 = vunpack.c.l.b16 %v418
    %v506 = vunpack.c.h.b16 %v418
    %v507 = vunpack.c.l.b16 %v419
    %v508 = vunpack.c.h.b16 %v419
    %v509 = vunpack.c.l.b16 %v420
    %v510 = vunpack.c.h.b16 %v420
    %v511 = vunpack.c.l.b16 %v421
    %v512 = vunpack.c.h.b16 %v421
    %v513 = vunpack.c.l.b16 %v422
    %v514 = vunpack.c.h.b16 %v422
    %v515 = vunpack.c.l.b16 %v423
    %v516 = vunpack.c.h.b16 %v423
    %v517 = vunpack.c.l.b16 %v424
    %v518 = vunpack.c.h.b16 %v424
    %v519 = vunpack.c.l.b16 %v425
    %v520 = vunpack.c.h.b16 %v425
    %v521 = vunpack.c.l.b16 %v426
    %v522 = vunpack.c.h.b16 %v426
    %v523 = vpack.c.b16 %v463, %v459
    %v524 = vpack.c.b16 %v464, %v460
    %v525 = vpack.c.b16 %v465, %v461
    %v526 = vpack.c.b16 %v466, %v462
    %v527 = vpack.c.b16 %v471, %v467
    %v528 = vpack.c.b16 %v472, %v468
    %v529 = vpack.c.b16 %v473, %v469
    %v530 = vpack.c.b16 %v474, %v470
    %v531 = vpack.c.b16 %v479, %v475
    %v532 = vpack.c.b16 %v480, %v476
    %v533 = vpack.c.b16 %v481, %v477
    %v534 = vpack.c.b16 %v482, %v478
    %v535 = vpack.c.b16 %v487, %v483
    %v536 = vpack.c.b16 %v488, %v484
    %v537 = vpack.c.b16 %v489, %v485
    %v538 = vpack.c.b16 %v490, %v486
    %v539 = vpack.c.b16 %v495, %v491
    %v540 = vpack.c.b16 %v496, %v492
    %v541 = vpack.c.b16 %v497, %v493
    %v542 = vpack.c.b16 %v498, %v494
    %v543 = vpack.c.b16 %v503, %v499
    %v544 = vpack.c.b16 %v504, %v500
    %v545 = vpack.c.b16 %v505, %v501
    %v546 = vpack.c.b16 %v506, %v502
    %v547 = vpack.c.b16 %v511, %v507
    %v548 = vpack.c.b16 %v512, %v508
    %v549 = vpack.c.b16 %v513, %v509
    %v550 = vpack.c.b16 %v514, %v510
    %v551 = vpack.c.b16 %v519, %v515
    %v552 = vpack.c.b16 %v520, %v516
    %v553 = vpack.c.b16 %v521, %v517
    %v554 = vpack.c.b16 %v522, %v518
    %587 = vmatpush.bf16.msra.mxu0 %v551
    %588 = vmatpush.bf16.msra.mxu0 %v547
    %589 = vmatpush.bf16.msra.mxu0 %v543
    %590 = vmatpush.bf16.msra.mxu0 %v539
    %591 = vmatpush.bf16.msra.mxu0 %v535
    %592 = vmatpush.bf16.msra.mxu0 %v531
    %593 = vmatpush.bf16.msra.mxu0 %v527
    %594 = vmatpush.bf16.msra.mxu0 %v523
    %595 = vmatmul.bf16.gmra.mxu0 %v394
    %v596 = vpop.f32.mrf.mxu0
    %v597 = vadd.f32 0.0, %v596
    %v598 = vpop.f32.mrf.mxu0
    %599 = vdwg.mxu0
    %600 = vmatpush.bf16.msra.mxu0 %v552
    %601 = vmatpush.bf16.msra.mxu0 %v548
    %602 = vmatpush.bf16.msra.mxu0 %v544
    %603 = vmatpush.bf16.msra.mxu0 %v540
    %604 = vmatpush.bf16.msra.mxu0 %v536
    %605 = vmatpush.bf16.msra.mxu0 %v532
    %606 = vmatpush.bf16.msra.mxu0 %v528
    %607 = vmatpush.bf16.msra.mxu0 %v524
    %608 = vmatmul.bf16.gmra.mxu0 %v394
    %v609 = vpop.f32.mrf.mxu0
    %v610 = vadd.f32 0.0, %v609
    %v611 = vpop.f32.mrf.mxu0
    %612 = vdwg.mxu0
    %613 = vmatpush.bf16.msra.mxu0 %v553
    %614 = vmatpush.bf16.msra.mxu0 %v549
    %615 = vmatpush.bf16.msra.mxu0 %v545
    %616 = vmatpush.bf16.msra.mxu0 %v541
    %617 = vmatpush.bf16.msra.mxu0 %v537
    %618 = vmatpush.bf16.msra.mxu0 %v533
    %619 = vmatpush.bf16.msra.mxu0 %v529
    %620 = vmatpush.bf16.msra.mxu0 %v525
    %621 = vmatmul.bf16.gmra.mxu0 %v394
    %v622 = vpop.f32.mrf.mxu0
    %v623 = vadd.f32 0.0, %v622
    %v624 = vpop.f32.mrf.mxu0
    %625 = vdwg.mxu0
    %626 = vmatpush.bf16.msra.mxu0 %v554
    %627 = vmatpush.bf16.msra.mxu0 %v550
    %628 = vmatpush.bf16.msra.mxu0 %v546
    %629 = vmatpush.bf16.msra.mxu0 %v542
    %630 = vmatpush.bf16.msra.mxu0 %v538
    %631 = vmatpush.bf16.msra.mxu0 %v534
    %632 = vmatpush.bf16.msra.mxu0 %v530
    %633 = vmatpush.bf16.msra.mxu0 %v526
    %634 = vmatmul.bf16.gmra.mxu0 %v394
    %v635 = vpop.f32.mrf.mxu0
    %v636 = vadd.f32 0.0, %v635
    %v637 = vpop.f32.mrf.mxu0
    %638 = vdwg.mxu0
    %v639 = vadd.f32 %v390, %v597
    %v640 = vadd.f32 %v391, %v610
    %v641 = vadd.f32 %v392, %v623
    %v642 = vadd.f32 %v393, %v636
    %v643 = vxor.u32 %v639, 2147483648
    %v644 = vxor.u32 %v640, 2147483648
    %v645 = vxor.u32 %v641, 2147483648
    %v646 = vmul.f32 %v643, 1.442695
    %v647 = vpow.pop %v646
    %v648 = vmul.f32 %v644, 1.442695
    %v649 = vpow.pop %v648
    %v650 = vmul.f32 %v645, 1.442695
    %v651 = vpow.pop %v650
    %v652 = vadd.f32 %v647, 1.0
    %v653 = vadd.f32 %v649, 1.0
    %v654 = vadd.f32 %v651, 1.0
    %v655 = vrcp.pop %v652
    %v656 = vmul.f32 %v652, %v655
    %v657 = vsub.f32 1.0, %v656
    %v658 = vmul.f32 %v655, %v657
    %v659 = vadd.f32 %v655, %v658
    %vm660 = vweird.f32 %v652
    %vm661 = vweird.f32 %v655
    %vm662 = vmor %vm660, %vm661
    %v663 = vsel %vm662, %v655, %v659
    %v664 = vand.u32 2147483647, %v652
    %vm665 = vcmp.eq.f32.partialorder %v664, 8.507059e+37
    %v666 = vand.u32 %v652, 2147483648
    %v667 = vor.u32 1.1754944e-38, %v666
    %v668 = vsel %vm665, %v667, %v663
    %v669 = vmul.f32 1.0, %v668
    %v670 = vrcp.pop %v653
    %v671 = vmul.f32 %v653, %v670
    %v672 = vsub.f32 1.0, %v671
    %v673 = vmul.f32 %v670, %v672
    %v674 = vadd.f32 %v670, %v673
    %vm675 = vweird.f32 %v653
    %vm676 = vweird.f32 %v670
    %vm677 = vmor %vm675, %vm676
    %v678 = vsel %vm677, %v670, %v674
    %v679 = vand.u32 2147483647, %v653
    %vm680 = vcmp.eq.f32.partialorder %v679, 8.507059e+37
    %v681 = vand.u32 %v653, 2147483648
    %v682 = vor.u32 1.1754944e-38, %v681
    %v683 = vsel %vm680, %v682, %v678
    %v684 = vmul.f32 1.0, %v683
    %v685 = vrcp.pop %v654
    %v686 = vmul.f32 %v654, %v685
    %v687 = vsub.f32 1.0, %v686
    %v688 = vmul.f32 %v685, %v687
    %v689 = vadd.f32 %v685, %v688
    %vm690 = vweird.f32 %v654
    %vm691 = vweird.f32 %v685
    %vm692 = vmor %vm690, %vm691
    %v693 = vsel %vm692, %v685, %v689
    %v694 = vand.u32 2147483647, %v654
    %vm695 = vcmp.eq.f32.partialorder %v694, 8.507059e+37
    %v696 = vand.u32 %v654, 2147483648
    %v697 = vor.u32 1.1754944e-38, %v696
    %v698 = vsel %vm695, %v697, %v693
    %v699 = vmul.f32 1.0, %v698
    %v700 = vtanh.pop %v642
    %v701 = vmul.f32 %v684, %v389
    %v702 = vmul.f32 %v669, %v700
    %v703 = vadd.f32 %v701, %v702
    %v704 = vtanh.pop %v703
    %v705 = vmul.f32 %v699, %v704
    %v706 = vld [vmem:[#allocation4 + $0x20] sm:$0xff]
    %v707 = vld [vmem:[#allocation4 + $0x28] sm:$0xff]
    %v708 = vld [vmem:[#allocation4 + $0x30] sm:$0xff]
    %v709 = vld [vmem:[#allocation4 + $0x38] sm:$0xff]
    %v710 = vpack.c.bf16 %v705, %v705
    %711 = vmatpush.bf16.msra.mxu0 %v551
    %712 = vmatpush.bf16.msra.mxu0 %v547
    %713 = vmatpush.bf16.msra.mxu0 %v543
    %714 = vmatpush.bf16.msra.mxu0 %v539
    %715 = vmatpush.bf16.msra.mxu0 %v535
    %716 = vmatpush.bf16.msra.mxu0 %v531
    %717 = vmatpush.bf16.msra.mxu0 %v527
    %718 = vmatpush.bf16.msra.mxu0 %v523
    %719 = vmatmul.bf16.gmra.mxu0 %v710
    %v720 = vpop.f32.mrf.mxu0
    %v721 = vadd.f32 0.0, %v720
    %v722 = vpop.f32.mrf.mxu0
    %723 = vdwg.mxu0
    %724 = vmatpush.bf16.msra.mxu0 %v552
    %725 = vmatpush.bf16.msra.mxu0 %v548
    %726 = vmatpush.bf16.msra.mxu0 %v544
    %727 = vmatpush.bf16.msra.mxu0 %v540
    %728 = vmatpush.bf16.msra.mxu0 %v536
    %729 = vmatpush.bf16.msra.mxu0 %v532
    %730 = vmatpush.bf16.msra.mxu0 %v528
    %731 = vmatpush.bf16.msra.mxu0 %v524
    %732 = vmatmul.bf16.gmra.mxu0 %v710
    %v733 = vpop.f32.mrf.mxu0
    %v734 = vadd.f32 0.0, %v733
    %v735 = vpop.f32.mrf.mxu0
    %736 = vdwg.mxu0
    %737 = vmatpush.bf16.msra.mxu0 %v553
    %738 = vmatpush.bf16.msra.mxu0 %v549
    %739 = vmatpush.bf16.msra.mxu0 %v545
    %740 = vmatpush.bf16.msra.mxu0 %v541
    %741 = vmatpush.bf16.msra.mxu0 %v537
    %742 = vmatpush.bf16.msra.mxu0 %v533
    %743 = vmatpush.bf16.msra.mxu0 %v529
    %744 = vmatpush.bf16.msra.mxu0 %v525
    %745 = vmatmul.bf16.gmra.mxu0 %v710
    %v746 = vpop.f32.mrf.mxu0
    %v747 = vadd.f32 0.0, %v746
    %v748 = vpop.f32.mrf.mxu0
    %749 = vdwg.mxu0
    %750 = vmatpush.bf16.msra.mxu0 %v554
    %751 = vmatpush.bf16.msra.mxu0 %v550
    %752 = vmatpush.bf16.msra.mxu0 %v546
    %753 = vmatpush.bf16.msra.mxu0 %v542
    %754 = vmatpush.bf16.msra.mxu0 %v538
    %755 = vmatpush.bf16.msra.mxu0 %v534
    %756 = vmatpush.bf16.msra.mxu0 %v530
    %757 = vmatpush.bf16.msra.mxu0 %v526
    %758 = vmatmul.bf16.gmra.mxu0 %v710
    %v759 = vpop.f32.mrf.mxu0
    %v760 = vadd.f32 0.0, %v759
    %v761 = vpop.f32.mrf.mxu0
    %762 = vdwg.mxu0
    %v763 = vadd.f32 %v706, %v721
    %v764 = vadd.f32 %v707, %v734
    %v765 = vadd.f32 %v708, %v747
    %v766 = vadd.f32 %v709, %v760
    %v767 = vxor.u32 %v763, 2147483648
    %v768 = vxor.u32 %v764, 2147483648
    %v769 = vxor.u32 %v765, 2147483648
    %v770 = vmul.f32 %v767, 1.442695
    %v771 = vpow.pop %v770
    %v772 = vmul.f32 %v768, 1.442695
    %v773 = vpow.pop %v772
    %v774 = vmul.f32 %v769, 1.442695
    %v775 = vpow.pop %v774
    %v776 = vadd.f32 %v771, 1.0
    %v777 = vadd.f32 %v773, 1.0
    %v778 = vadd.f32 %v775, 1.0
    %v779 = vrcp.pop %v776
    %v780 = vmul.f32 %v776, %v779
    %v781 = vsub.f32 1.0, %v780
    %v782 = vmul.f32 %v779, %v781
    %v783 = vadd.f32 %v779, %v782
    %vm784 = vweird.f32 %v776
    %vm785 = vweird.f32 %v779
    %vm786 = vmor %vm784, %vm785
    %v787 = vsel %vm786, %v779, %v783
    %v788 = vand.u32 2147483647, %v776
    %vm789 = vcmp.eq.f32.partialorder %v788, 8.507059e+37
    %v790 = vand.u32 %v776, 2147483648
    %v791 = vor.u32 1.1754944e-38, %v790
    %v792 = vsel %vm789, %v791, %v787
    %v793 = vmul.f32 1.0, %v792
    %v794 = vrcp.pop %v777
    %v795 = vmul.f32 %v777, %v794
    %v796 = vsub.f32 1.0, %v795
    %v797 = vmul.f32 %v794, %v796
    %v798 = vadd.f32 %v794, %v797
    %vm799 = vweird.f32 %v777
    %vm800 = vweird.f32 %v794
    %vm801 = vmor %vm799, %vm800
    %v802 = vsel %vm801, %v794, %v798
    %v803 = vand.u32 2147483647, %v777
    %vm804 = vcmp.eq.f32.partialorder %v803, 8.507059e+37
    %v805 = vand.u32 %v777, 2147483648
    %v806 = vor.u32 1.1754944e-38, %v805
    %v807 = vsel %vm804, %v806, %v802
    %v808 = vmul.f32 1.0, %v807
    %v809 = vrcp.pop %v778
    %v810 = vmul.f32 %v778, %v809
    %v811 = vsub.f32 1.0, %v810
    %v812 = vmul.f32 %v809, %v811
    %v813 = vadd.f32 %v809, %v812
    %vm814 = vweird.f32 %v778
    %vm815 = vweird.f32 %v809
    %vm816 = vmor %vm814, %vm815
    %v817 = vsel %vm816, %v809, %v813
    %v818 = vand.u32 2147483647, %v778
    %vm819 = vcmp.eq.f32.partialorder %v818, 8.507059e+37
    %v820 = vand.u32 %v778, 2147483648
    %v821 = vor.u32 1.1754944e-38, %v820
    %v822 = vsel %vm819, %v821, %v817
    %v823 = vmul.f32 1.0, %v822
    %v824 = vtanh.pop %v766
    %v825 = vmul.f32 %v808, %v703
    %v826 = vmul.f32 %v793, %v824
    %v827 = vadd.f32 %v825, %v826
    %v828 = vtanh.pop %v827
    %v829 = vmul.f32 %v823, %v828
    %v830 = vld [vmem:[#allocation4 + $0x40] sm:$0xff]
    %v831 = vld [vmem:[#allocation4 + $0x48] sm:$0xff]
    %v832 = vld [vmem:[#allocation4 + $0x50] sm:$0xff]
    %v833 = vld [vmem:[#allocation4 + $0x58] sm:$0xff]
    %v834 = vpack.c.bf16 %v829, %v829
    %835 = vmatpush.bf16.msra.mxu0 %v551
    %836 = vmatpush.bf16.msra.mxu0 %v547
    %837 = vmatpush.bf16.msra.mxu0 %v543
    %838 = vmatpush.bf16.msra.mxu0 %v539
    %839 = vmatpush.bf16.msra.mxu0 %v535
    %840 = vmatpush.bf16.msra.mxu0 %v531
    %841 = vmatpush.bf16.msra.mxu0 %v527
    %842 = vmatpush.bf16.msra.mxu0 %v523
    %843 = vmatmul.bf16.gmra.mxu0 %v834
    %v844 = vpop.f32.mrf.mxu0
    %v845 = vadd.f32 0.0, %v844
    %v846 = vpop.f32.mrf.mxu0
    %847 = vdwg.mxu0
    %848 = vmatpush.bf16.msra.mxu0 %v552
    %849 = vmatpush.bf16.msra.mxu0 %v548
    %850 = vmatpush.bf16.msra.mxu0 %v544
    %851 = vmatpush.bf16.msra.mxu0 %v540
    %852 = vmatpush.bf16.msra.mxu0 %v536
    %853 = vmatpush.bf16.msra.mxu0 %v532
    %854 = vmatpush.bf16.msra.mxu0 %v528
    %855 = vmatpush.bf16.msra.mxu0 %v524
    %856 = vmatmul.bf16.gmra.mxu0 %v834
    %v857 = vpop.f32.mrf.mxu0
    %v858 = vadd.f32 0.0, %v857
    %v859 = vpop.f32.mrf.mxu0
    %860 = vdwg.mxu0
    %861 = vmatpush.bf16.msra.mxu0 %v553
    %862 = vmatpush.bf16.msra.mxu0 %v549
    %863 = vmatpush.bf16.msra.mxu0 %v545
    %864 = vmatpush.bf16.msra.mxu0 %v541
    %865 = vmatpush.bf16.msra.mxu0 %v537
    %866 = vmatpush.bf16.msra.mxu0 %v533
    %867 = vmatpush.bf16.msra.mxu0 %v529
    %868 = vmatpush.bf16.msra.mxu0 %v525
    %869 = vmatmul.bf16.gmra.mxu0 %v834
    %v870 = vpop.f32.mrf.mxu0
    %v871 = vadd.f32 0.0, %v870
    %v872 = vpop.f32.mrf.mxu0
    %873 = vdwg.mxu0
    %874 = vmatpush.bf16.msra.mxu0 %v554
    %875 = vmatpush.bf16.msra.mxu0 %v550
    %876 = vmatpush.bf16.msra.mxu0 %v546
    %877 = vmatpush.bf16.msra.mxu0 %v542
    %878 = vmatpush.bf16.msra.mxu0 %v538
    %879 = vmatpush.bf16.msra.mxu0 %v534
    %880 = vmatpush.bf16.msra.mxu0 %v530
    %881 = vmatpush.bf16.msra.mxu0 %v526
    %882 = vmatmul.bf16.gmra.mxu0 %v834
    %v883 = vpop.f32.mrf.mxu0
    %v884 = vadd.f32 0.0, %v883
    %v885 = vpop.f32.mrf.mxu0
    %886 = vdwg.mxu0
    %v887 = vadd.f32 %v830, %v845
    %v888 = vadd.f32 %v831, %v858
    %v889 = vadd.f32 %v832, %v871
    %v890 = vadd.f32 %v833, %v884
    %v891 = vxor.u32 %v887, 2147483648
    %v892 = vxor.u32 %v888, 2147483648
    %v893 = vxor.u32 %v889, 2147483648
    %v894 = vmul.f32 %v891, 1.442695
    %v895 = vpow.pop %v894
    %v896 = vmul.f32 %v892, 1.442695
    %v897 = vpow.pop %v896
    %v898 = vmul.f32 %v893, 1.442695
    %v899 = vpow.pop %v898
    %v900 = vadd.f32 %v895, 1.0
    %v901 = vadd.f32 %v897, 1.0
    %v902 = vadd.f32 %v899, 1.0
    %v903 = vrcp.pop %v900
    %v904 = vmul.f32 %v900, %v903
    %v905 = vsub.f32 1.0, %v904
    %v906 = vmul.f32 %v903, %v905
    %v907 = vadd.f32 %v903, %v906
    %vm908 = vweird.f32 %v900
    %vm909 = vweird.f32 %v903
    %vm910 = vmor %vm908, %vm909
    %v911 = vsel %vm910, %v903, %v907
    %v912 = vand.u32 2147483647, %v900
    %vm913 = vcmp.eq.f32.partialorder %v912, 8.507059e+37
    %v914 = vand.u32 %v900, 2147483648
    %v915 = vor.u32 1.1754944e-38, %v914
    %v916 = vsel %vm913, %v915, %v911
    %v917 = vmul.f32 1.0, %v916
    %v918 = vrcp.pop %v901
    %v919 = vmul.f32 %v901, %v918
    %v920 = vsub.f32 1.0, %v919
    %v921 = vmul.f32 %v918, %v920
    %v922 = vadd.f32 %v918, %v921
    %vm923 = vweird.f32 %v901
    %vm924 = vweird.f32 %v918
    %vm925 = vmor %vm923, %vm924
    %v926 = vsel %vm925, %v918, %v922
    %v927 = vand.u32 2147483647, %v901
    %vm928 = vcmp.eq.f32.partialorder %v927, 8.507059e+37
    %v929 = vand.u32 %v901, 2147483648
    %v930 = vor.u32 1.1754944e-38, %v929
    %v931 = vsel %vm928, %v930, %v926
    %v932 = vmul.f32 1.0, %v931
    %v933 = vrcp.pop %v902
    %v934 = vmul.f32 %v902, %v933
    %v935 = vsub.f32 1.0, %v934
    %v936 = vmul.f32 %v933, %v935
    %v937 = vadd.f32 %v933, %v936
    %vm938 = vweird.f32 %v902
    %vm939 = vweird.f32 %v933
    %vm940 = vmor %vm938, %vm939
    %v941 = vsel %vm940, %v933, %v937
    %v942 = vand.u32 2147483647, %v902
    %vm943 = vcmp.eq.f32.partialorder %v942, 8.507059e+37
    %v944 = vand.u32 %v902, 2147483648
    %v945 = vor.u32 1.1754944e-38, %v944
    %v946 = vsel %vm943, %v945, %v941
    %v947 = vmul.f32 1.0, %v946
    %v948 = vtanh.pop %v890
    %v949 = vmul.f32 %v932, %v827
    %v950 = vmul.f32 %v917, %v948
    %v951 = vadd.f32 %v949, %v950
    %v952 = vtanh.pop %v951
    %v953 = vmul.f32 %v947, %v952
    %v954 = vld [vmem:[#allocation4 + $0x60] sm:$0xff]
    %v955 = vld [vmem:[#allocation4 + $0x68] sm:$0xff]
    %v956 = vld [vmem:[#allocation4 + $0x70] sm:$0xff]
    %v957 = vld [vmem:[#allocation4 + $0x78] sm:$0xff]
    %v958 = vpack.c.bf16 %v953, %v953
    %959 = vmatpush.bf16.msra.mxu0 %v551
    %960 = vmatpush.bf16.msra.mxu0 %v547
    %961 = vmatpush.bf16.msra.mxu0 %v543
    %962 = vmatpush.bf16.msra.mxu0 %v539
    %963 = vmatpush.bf16.msra.mxu0 %v535
    %964 = vmatpush.bf16.msra.mxu0 %v531
    %965 = vmatpush.bf16.msra.mxu0 %v527
    %966 = vmatpush.bf16.msra.mxu0 %v523
    %967 = vmatmul.bf16.gmra.mxu0 %v958
    %v968 = vpop.f32.mrf.mxu0
    %v969 = vadd.f32 0.0, %v968
    %v970 = vpop.f32.mrf.mxu0
    %971 = vdwg.mxu0
    %972 = vmatpush.bf16.msra.mxu0 %v552
    %973 = vmatpush.bf16.msra.mxu0 %v548
    %974 = vmatpush.bf16.msra.mxu0 %v544
    %975 = vmatpush.bf16.msra.mxu0 %v540
    %976 = vmatpush.bf16.msra.mxu0 %v536
    %977 = vmatpush.bf16.msra.mxu0 %v532
    %978 = vmatpush.bf16.msra.mxu0 %v528
    %979 = vmatpush.bf16.msra.mxu0 %v524
    %980 = vmatmul.bf16.gmra.mxu0 %v958
    %v981 = vpop.f32.mrf.mxu0
    %v982 = vadd.f32 0.0, %v981
    %v983 = vpop.f32.mrf.mxu0
    %984 = vdwg.mxu0
    %985 = vmatpush.bf16.msra.mxu0 %v553
    %986 = vmatpush.bf16.msra.mxu0 %v549
    %987 = vmatpush.bf16.msra.mxu0 %v545
    %988 = vmatpush.bf16.msra.mxu0 %v541
    %989 = vmatpush.bf16.msra.mxu0 %v537
    %990 = vmatpush.bf16.msra.mxu0 %v533
    %991 = vmatpush.bf16.msra.mxu0 %v529
    %992 = vmatpush.bf16.msra.mxu0 %v525
    %993 = vmatmul.bf16.gmra.mxu0 %v958
    %v994 = vpop.f32.mrf.mxu0
    %v995 = vadd.f32 0.0, %v994
    %v996 = vpop.f32.mrf.mxu0
    %997 = vdwg.mxu0
    %998 = vmatpush.bf16.msra.mxu0 %v554
    %999 = vmatpush.bf16.msra.mxu0 %v550
    %1000 = vmatpush.bf16.msra.mxu0 %v546
    %1001 = vmatpush.bf16.msra.mxu0 %v542
    %1002 = vmatpush.bf16.msra.mxu0 %v538
    %1003 = vmatpush.bf16.msra.mxu0 %v534
    %1004 = vmatpush.bf16.msra.mxu0 %v530
    %1005 = vmatpush.bf16.msra.mxu0 %v526
    %1006 = vmatmul.bf16.gmra.mxu0 %v958
    %v1007 = vpop.f32.mrf.mxu0
    %v1008 = vadd.f32 0.0, %v1007
    %v1009 = vpop.f32.mrf.mxu0
    %1010 = vdwg.mxu0
    %v1011 = vadd.f32 %v954, %v969
    %v1012 = vadd.f32 %v955, %v982
    %v1013 = vadd.f32 %v956, %v995
    %v1014 = vadd.f32 %v957, %v1008
    %v1015 = vxor.u32 %v1011, 2147483648
    %v1016 = vxor.u32 %v1012, 2147483648
    %v1017 = vxor.u32 %v1013, 2147483648
    %v1018 = vmul.f32 %v1015, 1.442695
    %v1019 = vpow.pop %v1018
    %v1020 = vmul.f32 %v1016, 1.442695
    %v1021 = vpow.pop %v1020
    %v1022 = vmul.f32 %v1017, 1.442695
    %v1023 = vpow.pop %v1022
    %v1024 = vadd.f32 %v1019, 1.0
    %v1025 = vadd.f32 %v1021, 1.0
    %v1026 = vadd.f32 %v1023, 1.0
    %v1027 = vrcp.pop %v1024
    %v1028 = vmul.f32 %v1024, %v1027
    %v1029 = vsub.f32 1.0, %v1028
    %v1030 = vmul.f32 %v1027, %v1029
    %v1031 = vadd.f32 %v1027, %v1030
    %vm1032 = vweird.f32 %v1024
    %vm1033 = vweird.f32 %v1027
    %vm1034 = vmor %vm1032, %vm1033
    %v1035 = vsel %vm1034, %v1027, %v1031
    %v1036 = vand.u32 2147483647, %v1024
    %vm1037 = vcmp.eq.f32.partialorder %v1036, 8.507059e+37
    %v1038 = vand.u32 %v1024, 2147483648
    %v1039 = vor.u32 1.1754944e-38, %v1038
    %v1040 = vsel %vm1037, %v1039, %v1035
    %v1041 = vmul.f32 1.0, %v1040
    %v1042 = vrcp.pop %v1025
    %v1043 = vmul.f32 %v1025, %v1042
    %v1044 = vsub.f32 1.0, %v1043
    %v1045 = vmul.f32 %v1042, %v1044
    %v1046 = vadd.f32 %v1042, %v1045
    %vm1047 = vweird.f32 %v1025
    %vm1048 = vweird.f32 %v1042
    %vm1049 = vmor %vm1047, %vm1048
    %v1050 = vsel %vm1049, %v1042, %v1046
    %v1051 = vand.u32 2147483647, %v1025
    %vm1052 = vcmp.eq.f32.partialorder %v1051, 8.507059e+37
    %v1053 = vand.u32 %v1025, 2147483648
    %v1054 = vor.u32 1.1754944e-38, %v1053
    %v1055 = vsel %vm1052, %v1054, %v1050
    %v1056 = vmul.f32 1.0, %v1055
    %v1057 = vrcp.pop %v1026
    %v1058 = vmul.f32 %v1026, %v1057
    %v1059 = vsub.f32 1.0, %v1058
    %v1060 = vmul.f32 %v1057, %v1059
    %v1061 = vadd.f32 %v1057, %v1060
    %vm1062 = vweird.f32 %v1026
    %vm1063 = vweird.f32 %v1057
    %vm1064 = vmor %vm1062, %vm1063
    %v1065 = vsel %vm1064, %v1057, %v1061
    %v1066 = vand.u32 2147483647, %v1026
    %vm1067 = vcmp.eq.f32.partialorder %v1066, 8.507059e+37
    %v1068 = vand.u32 %v1026, 2147483648
    %v1069 = vor.u32 1.1754944e-38, %v1068
    %v1070 = vsel %vm1067, %v1069, %v1065
    %v1071 = vmul.f32 1.0, %v1070
    %v1072 = vtanh.pop %v1014
    %v1073 = vmul.f32 %v1056, %v951
    %v1074 = vmul.f32 %v1041, %v1072
    %v1075 = vadd.f32 %v1073, %v1074
    %v1076 = vtanh.pop %v1075
    %v1077 = vmul.f32 %v1071, %v1076
    %v1078 = vld [vmem:[#allocation4 + $0x80] sm:$0xff]
    %v1079 = vld [vmem:[#allocation4 + $0x88] sm:$0xff]
    %v1080 = vld [vmem:[#allocation4 + $0x90] sm:$0xff]
    %v1081 = vld [vmem:[#allocation4 + $0x98] sm:$0xff]
    %v1082 = vpack.c.bf16 %v1077, %v1077
    %1083 = vmatpush.bf16.msra.mxu0 %v551
    %1084 = vmatpush.bf16.msra.mxu0 %v547
    %1085 = vmatpush.bf16.msra.mxu0 %v543
    %1086 = vmatpush.bf16.msra.mxu0 %v539
    %1087 = vmatpush.bf16.msra.mxu0 %v535
    %1088 = vmatpush.bf16.msra.mxu0 %v531
    %1089 = vmatpush.bf16.msra.mxu0 %v527
    %1090 = vmatpush.bf16.msra.mxu0 %v523
    %1091 = vmatmul.bf16.gmra.mxu0 %v1082
    %v1092 = vpop.f32.mrf.mxu0
    %v1093 = vadd.f32 0.0, %v1092
    %v1094 = vpop.f32.mrf.mxu0
    %1095 = vdwg.mxu0
    %1096 = vmatpush.bf16.msra.mxu0 %v552
    %1097 = vmatpush.bf16.msra.mxu0 %v548
    %1098 = vmatpush.bf16.msra.mxu0 %v544
    %1099 = vmatpush.bf16.msra.mxu0 %v540
    %1100 = vmatpush.bf16.msra.mxu0 %v536
    %1101 = vmatpush.bf16.msra.mxu0 %v532
    %1102 = vmatpush.bf16.msra.mxu0 %v528
    %1103 = vmatpush.bf16.msra.mxu0 %v524
    %1104 = vmatmul.bf16.gmra.mxu0 %v1082
    %v1105 = vpop.f32.mrf.mxu0
    %v1106 = vadd.f32 0.0, %v1105
    %v1107 = vpop.f32.mrf.mxu0
    %1108 = vdwg.mxu0
    %1109 = vmatpush.bf16.msra.mxu0 %v553
    %1110 = vmatpush.bf16.msra.mxu0 %v549
    %1111 = vmatpush.bf16.msra.mxu0 %v545
    %1112 = vmatpush.bf16.msra.mxu0 %v541
    %1113 = vmatpush.bf16.msra.mxu0 %v537
    %1114 = vmatpush.bf16.msra.mxu0 %v533
    %1115 = vmatpush.bf16.msra.mxu0 %v529
    %1116 = vmatpush.bf16.msra.mxu0 %v525
    %1117 = vmatmul.bf16.gmra.mxu0 %v1082
    %v1118 = vpop.f32.mrf.mxu0
    %v1119 = vadd.f32 0.0, %v1118
    %v1120 = vpop.f32.mrf.mxu0
    %1121 = vdwg.mxu0
    %1122 = vmatpush.bf16.msra.mxu0 %v554
    %1123 = vmatpush.bf16.msra.mxu0 %v550
    %1124 = vmatpush.bf16.msra.mxu0 %v546
    %1125 = vmatpush.bf16.msra.mxu0 %v542
    %1126 = vmatpush.bf16.msra.mxu0 %v538
    %1127 = vmatpush.bf16.msra.mxu0 %v534
    %1128 = vmatpush.bf16.msra.mxu0 %v530
    %1129 = vmatpush.bf16.msra.mxu0 %v526
    %1130 = vmatmul.bf16.gmra.mxu0 %v1082
    %v1131 = vpop.f32.mrf.mxu0
    %v1132 = vadd.f32 0.0, %v1131
    %v1133 = vpop.f32.mrf.mxu0
    %1134 = vdwg.mxu0
    %v1135 = vadd.f32 %v1078, %v1093
    %v1136 = vadd.f32 %v1079, %v1106
    %v1137 = vadd.f32 %v1080, %v1119
    %v1138 = vadd.f32 %v1081, %v1132
    %v1139 = vxor.u32 %v1135, 2147483648
    %v1140 = vxor.u32 %v1136, 2147483648
    %v1141 = vxor.u32 %v1137, 2147483648
    %v1142 = vmul.f32 %v1139, 1.442695
    %v1143 = vpow.pop %v1142
    %v1144 = vmul.f32 %v1140, 1.442695
    %v1145 = vpow.pop %v1144
    %v1146 = vmul.f32 %v1141, 1.442695
    %v1147 = vpow.pop %v1146
    %v1148 = vadd.f32 %v1143, 1.0
    %v1149 = vadd.f32 %v1145, 1.0
    %v1150 = vadd.f32 %v1147, 1.0
    %v1151 = vrcp.pop %v1148
    %v1152 = vmul.f32 %v1148, %v1151
    %v1153 = vsub.f32 1.0, %v1152
    %v1154 = vmul.f32 %v1151, %v1153
    %v1155 = vadd.f32 %v1151, %v1154
    %vm1156 = vweird.f32 %v1148
    %vm1157 = vweird.f32 %v1151
    %vm1158 = vmor %vm1156, %vm1157
    %v1159 = vsel %vm1158, %v1151, %v1155
    %v1160 = vand.u32 2147483647, %v1148
    %vm1161 = vcmp.eq.f32.partialorder %v1160, 8.507059e+37
    %v1162 = vand.u32 %v1148, 2147483648
    %v1163 = vor.u32 1.1754944e-38, %v1162
    %v1164 = vsel %vm1161, %v1163, %v1159
    %v1165 = vmul.f32 1.0, %v1164
    %v1166 = vrcp.pop %v1149
    %v1167 = vmul.f32 %v1149, %v1166
    %v1168 = vsub.f32 1.0, %v1167
    %v1169 = vmul.f32 %v1166, %v1168
    %v1170 = vadd.f32 %v1166, %v1169
    %vm1171 = vweird.f32 %v1149
    %vm1172 = vweird.f32 %v1166
    %vm1173 = vmor %vm1171, %vm1172
    %v1174 = vsel %vm1173, %v1166, %v1170
    %v1175 = vand.u32 2147483647, %v1149
    %vm1176 = vcmp.eq.f32.partialorder %v1175, 8.507059e+37
    %v1177 = vand.u32 %v1149, 2147483648
    %v1178 = vor.u32 1.1754944e-38, %v1177
    %v1179 = vsel %vm1176, %v1178, %v1174
    %v1180 = vmul.f32 1.0, %v1179
    %v1181 = vrcp.pop %v1150
    %v1182 = vmul.f32 %v1150, %v1181
    %v1183 = vsub.f32 1.0, %v1182
    %v1184 = vmul.f32 %v1181, %v1183
    %v1185 = vadd.f32 %v1181, %v1184
    %vm1186 = vweird.f32 %v1150
    %vm1187 = vweird.f32 %v1181
    %vm1188 = vmor %vm1186, %vm1187
    %v1189 = vsel %vm1188, %v1181, %v1185
    %v1190 = vand.u32 2147483647, %v1150
    %vm1191 = vcmp.eq.f32.partialorder %v1190, 8.507059e+37
    %v1192 = vand.u32 %v1150, 2147483648
    %v1193 = vor.u32 1.1754944e-38, %v1192
    %v1194 = vsel %vm1191, %v1193, %v1189
    %v1195 = vmul.f32 1.0, %v1194
    %v1196 = vtanh.pop %v1138
    %v1197 = vmul.f32 %v1180, %v1075
    %v1198 = vmul.f32 %v1165, %v1196
    %v1199 = vadd.f32 %v1197, %v1198
    %v1200 = vtanh.pop %v1199
    %v1201 = vmul.f32 %v1195, %v1200
    %v1202 = vld [vmem:[#allocation4 + $0xa0] sm:$0xff]
    %v1203 = vld [vmem:[#allocation4 + $0xa8] sm:$0xff]
    %v1204 = vld [vmem:[#allocation4 + $0xb0] sm:$0xff]
    %v1205 = vld [vmem:[#allocation4 + $0xb8] sm:$0xff]
    %v1206 = vpack.c.bf16 %v1201, %v1201
    %1207 = vmatpush.bf16.msra.mxu0 %v551
    %1208 = vmatpush.bf16.msra.mxu0 %v547
    %1209 = vmatpush.bf16.msra.mxu0 %v543
    %1210 = vmatpush.bf16.msra.mxu0 %v539
    %1211 = vmatpush.bf16.msra.mxu0 %v535
    %1212 = vmatpush.bf16.msra.mxu0 %v531
    %1213 = vmatpush.bf16.msra.mxu0 %v527
    %1214 = vmatpush.bf16.msra.mxu0 %v523
    %1215 = vmatmul.bf16.gmra.mxu0 %v1206
    %v1216 = vpop.f32.mrf.mxu0
    %v1217 = vadd.f32 0.0, %v1216
    %v1218 = vpop.f32.mrf.mxu0
    %1219 = vdwg.mxu0
    %1220 = vmatpush.bf16.msra.mxu0 %v552
    %1221 = vmatpush.bf16.msra.mxu0 %v548
    %1222 = vmatpush.bf16.msra.mxu0 %v544
    %1223 = vmatpush.bf16.msra.mxu0 %v540
    %1224 = vmatpush.bf16.msra.mxu0 %v536
    %1225 = vmatpush.bf16.msra.mxu0 %v532
    %1226 = vmatpush.bf16.msra.mxu0 %v528
    %1227 = vmatpush.bf16.msra.mxu0 %v524
    %1228 = vmatmul.bf16.gmra.mxu0 %v1206
    %v1229 = vpop.f32.mrf.mxu0
    %v1230 = vadd.f32 0.0, %v1229
    %v1231 = vpop.f32.mrf.mxu0
    %1232 = vdwg.mxu0
    %1233 = vmatpush.bf16.msra.mxu0 %v553
    %1234 = vmatpush.bf16.msra.mxu0 %v549
    %1235 = vmatpush.bf16.msra.mxu0 %v545
    %1236 = vmatpush.bf16.msra.mxu0 %v541
    %1237 = vmatpush.bf16.msra.mxu0 %v537
    %1238 = vmatpush.bf16.msra.mxu0 %v533
    %1239 = vmatpush.bf16.msra.mxu0 %v529
    %1240 = vmatpush.bf16.msra.mxu0 %v525
    %1241 = vmatmul.bf16.gmra.mxu0 %v1206
    %v1242 = vpop.f32.mrf.mxu0
    %v1243 = vadd.f32 0.0, %v1242
    %v1244 = vpop.f32.mrf.mxu0
    %1245 = vdwg.mxu0
    %1246 = vmatpush.bf16.msra.mxu0 %v554
    %1247 = vmatpush.bf16.msra.mxu0 %v550
    %1248 = vmatpush.bf16.msra.mxu0 %v546
    %1249 = vmatpush.bf16.msra.mxu0 %v542
    %1250 = vmatpush.bf16.msra.mxu0 %v538
    %1251 = vmatpush.bf16.msra.mxu0 %v534
    %1252 = vmatpush.bf16.msra.mxu0 %v530
    %1253 = vmatpush.bf16.msra.mxu0 %v526
    %1254 = vmatmul.bf16.gmra.mxu0 %v1206
    %v1255 = vpop.f32.mrf.mxu0
    %v1256 = vadd.f32 0.0, %v1255
    %v1257 = vpop.f32.mrf.mxu0
    %1258 = vdwg.mxu0
    %v1259 = vadd.f32 %v1202, %v1217
    %v1260 = vadd.f32 %v1203, %v1230
    %v1261 = vadd.f32 %v1204, %v1243
    %v1262 = vadd.f32 %v1205, %v1256
    %v1263 = vxor.u32 %v1259, 2147483648
    %v1264 = vxor.u32 %v1260, 2147483648
    %v1265 = vxor.u32 %v1261, 2147483648
    %v1266 = vmul.f32 %v1263, 1.442695
    %v1267 = vpow.pop %v1266
    %v1268 = vmul.f32 %v1264, 1.442695
    %v1269 = vpow.pop %v1268
    %v1270 = vmul.f32 %v1265, 1.442695
    %v1271 = vpow.pop %v1270
    %v1272 = vadd.f32 %v1267, 1.0
    %v1273 = vadd.f32 %v1269, 1.0
    %v1274 = vadd.f32 %v1271, 1.0
    %v1275 = vrcp.pop %v1272
    %v1276 = vmul.f32 %v1272, %v1275
    %v1277 = vsub.f32 1.0, %v1276
    %v1278 = vmul.f32 %v1275, %v1277
    %v1279 = vadd.f32 %v1275, %v1278
    %vm1280 = vweird.f32 %v1272
    %vm1281 = vweird.f32 %v1275
    %vm1282 = vmor %vm1280, %vm1281
    %v1283 = vsel %vm1282, %v1275, %v1279
    %v1284 = vand.u32 2147483647, %v1272
    %vm1285 = vcmp.eq.f32.partialorder %v1284, 8.507059e+37
    %v1286 = vand.u32 %v1272, 2147483648
    %v1287 = vor.u32 1.1754944e-38, %v1286
    %v1288 = vsel %vm1285, %v1287, %v1283
    %v1289 = vmul.f32 1.0, %v1288
    %v1290 = vrcp.pop %v1273
    %v1291 = vmul.f32 %v1273, %v1290
    %v1292 = vsub.f32 1.0, %v1291
    %v1293 = vmul.f32 %v1290, %v1292
    %v1294 = vadd.f32 %v1290, %v1293
    %vm1295 = vweird.f32 %v1273
    %vm1296 = vweird.f32 %v1290
    %vm1297 = vmor %vm1295, %vm1296
    %v1298 = vsel %vm1297, %v1290, %v1294
    %v1299 = vand.u32 2147483647, %v1273
    %vm1300 = vcmp.eq.f32.partialorder %v1299, 8.507059e+37
    %v1301 = vand.u32 %v1273, 2147483648
    %v1302 = vor.u32 1.1754944e-38, %v1301
    %v1303 = vsel %vm1300, %v1302, %v1298
    %v1304 = vmul.f32 1.0, %v1303
    %v1305 = vrcp.pop %v1274
    %v1306 = vmul.f32 %v1274, %v1305
    %v1307 = vsub.f32 1.0, %v1306
    %v1308 = vmul.f32 %v1305, %v1307
    %v1309 = vadd.f32 %v1305, %v1308
    %vm1310 = vweird.f32 %v1274
    %vm1311 = vweird.f32 %v1305
    %vm1312 = vmor %vm1310, %vm1311
    %v1313 = vsel %vm1312, %v1305, %v1309
    %v1314 = vand.u32 2147483647, %v1274
    %vm1315 = vcmp.eq.f32.partialorder %v1314, 8.507059e+37
    %v1316 = vand.u32 %v1274, 2147483648
    %v1317 = vor.u32 1.1754944e-38, %v1316
    %v1318 = vsel %vm1315, %v1317, %v1313
    %v1319 = vmul.f32 1.0, %v1318
    %v1320 = vtanh.pop %v1262
    %v1321 = vmul.f32 %v1304, %v1199
    %v1322 = vmul.f32 %v1289, %v1320
    %v1323 = vadd.f32 %v1321, %v1322
    %v1324 = vtanh.pop %v1323
    %v1325 = vmul.f32 %v1319, %v1324
    %v1326 = vld [vmem:[#allocation4 + $0xc0] sm:$0xff]
    %v1327 = vld [vmem:[#allocation4 + $0xc8] sm:$0xff]
    %v1328 = vld [vmem:[#allocation4 + $0xd0] sm:$0xff]
    %v1329 = vld [vmem:[#allocation4 + $0xd8] sm:$0xff]
    %v1330 = vpack.c.bf16 %v1325, %v1325
    %1331 = vmatpush.bf16.msra.mxu0 %v551
    %1332 = vmatpush.bf16.msra.mxu0 %v547
    %1333 = vmatpush.bf16.msra.mxu0 %v543
    %1334 = vmatpush.bf16.msra.mxu0 %v539
    %1335 = vmatpush.bf16.msra.mxu0 %v535
    %1336 = vmatpush.bf16.msra.mxu0 %v531
    %1337 = vmatpush.bf16.msra.mxu0 %v527
    %1338 = vmatpush.bf16.msra.mxu0 %v523
    %1339 = vmatmul.bf16.gmra.mxu0 %v1330
    %v1340 = vpop.f32.mrf.mxu0
    %v1341 = vadd.f32 0.0, %v1340
    %v1342 = vpop.f32.mrf.mxu0
    %1343 = vdwg.mxu0
    %1344 = vmatpush.bf16.msra.mxu0 %v552
    %1345 = vmatpush.bf16.msra.mxu0 %v548
    %1346 = vmatpush.bf16.msra.mxu0 %v544
    %1347 = vmatpush.bf16.msra.mxu0 %v540
    %1348 = vmatpush.bf16.msra.mxu0 %v536
    %1349 = vmatpush.bf16.msra.mxu0 %v532
    %1350 = vmatpush.bf16.msra.mxu0 %v528
    %1351 = vmatpush.bf16.msra.mxu0 %v524
    %1352 = vmatmul.bf16.gmra.mxu0 %v1330
    %v1353 = vpop.f32.mrf.mxu0
    %v1354 = vadd.f32 0.0, %v1353
    %v1355 = vpop.f32.mrf.mxu0
    %1356 = vdwg.mxu0
    %1357 = vmatpush.bf16.msra.mxu0 %v553
    %1358 = vmatpush.bf16.msra.mxu0 %v549
    %1359 = vmatpush.bf16.msra.mxu0 %v545
    %1360 = vmatpush.bf16.msra.mxu0 %v541
    %1361 = vmatpush.bf16.msra.mxu0 %v537
    %1362 = vmatpush.bf16.msra.mxu0 %v533
    %1363 = vmatpush.bf16.msra.mxu0 %v529
    %1364 = vmatpush.bf16.msra.mxu0 %v525
    %1365 = vmatmul.bf16.gmra.mxu0 %v1330
    %v1366 = vpop.f32.mrf.mxu0
    %v1367 = vadd.f32 0.0, %v1366
    %v1368 = vpop.f32.mrf.mxu0
    %1369 = vdwg.mxu0
    %1370 = vmatpush.bf16.msra.mxu0 %v554
    %1371 = vmatpush.bf16.msra.mxu0 %v550
    %1372 = vmatpush.bf16.msra.mxu0 %v546
    %1373 = vmatpush.bf16.msra.mxu0 %v542
    %1374 = vmatpush.bf16.msra.mxu0 %v538
    %1375 = vmatpush.bf16.msra.mxu0 %v534
    %1376 = vmatpush.bf16.msra.mxu0 %v530
    %1377 = vmatpush.bf16.msra.mxu0 %v526
    %1378 = vmatmul.bf16.gmra.mxu0 %v1330
    %v1379 = vpop.f32.mrf.mxu0
    %v1380 = vadd.f32 0.0, %v1379
    %v1381 = vpop.f32.mrf.mxu0
    %1382 = vdwg.mxu0
    %v1383 = vadd.f32 %v1326, %v1341
    %v1384 = vadd.f32 %v1327, %v1354
    %v1385 = vadd.f32 %v1328, %v1367
    %v1386 = vadd.f32 %v1329, %v1380
    %v1387 = vxor.u32 %v1383, 2147483648
    %v1388 = vxor.u32 %v1384, 2147483648
    %v1389 = vxor.u32 %v1385, 2147483648
    %v1390 = vmul.f32 %v1387, 1.442695
    %v1391 = vpow.pop %v1390
    %v1392 = vmul.f32 %v1388, 1.442695
    %v1393 = vpow.pop %v1392
    %v1394 = vmul.f32 %v1389, 1.442695
    %v1395 = vpow.pop %v1394
    %v1396 = vadd.f32 %v1391, 1.0
    %v1397 = vadd.f32 %v1393, 1.0
    %v1398 = vadd.f32 %v1395, 1.0
    %v1399 = vrcp.pop %v1396
    %v1400 = vmul.f32 %v1396, %v1399
    %v1401 = vsub.f32 1.0, %v1400
    %v1402 = vmul.f32 %v1399, %v1401
    %v1403 = vadd.f32 %v1399, %v1402
    %vm1404 = vweird.f32 %v1396
    %vm1405 = vweird.f32 %v1399
    %vm1406 = vmor %vm1404, %vm1405
    %v1407 = vsel %vm1406, %v1399, %v1403
    %v1408 = vand.u32 2147483647, %v1396
    %vm1409 = vcmp.eq.f32.partialorder %v1408, 8.507059e+37
    %v1410 = vand.u32 %v1396, 2147483648
    %v1411 = vor.u32 1.1754944e-38, %v1410
    %v1412 = vsel %vm1409, %v1411, %v1407
    %v1413 = vmul.f32 1.0, %v1412
    %v1414 = vrcp.pop %v1397
    %v1415 = vmul.f32 %v1397, %v1414
    %v1416 = vsub.f32 1.0, %v1415
    %v1417 = vmul.f32 %v1414, %v1416
    %v1418 = vadd.f32 %v1414, %v1417
    %vm1419 = vweird.f32 %v1397
    %vm1420 = vweird.f32 %v1414
    %vm1421 = vmor %vm1419, %vm1420
    %v1422 = vsel %vm1421, %v1414, %v1418
    %v1423 = vand.u32 2147483647, %v1397
    %vm1424 = vcmp.eq.f32.partialorder %v1423, 8.507059e+37
    %v1425 = vand.u32 %v1397, 2147483648
    %v1426 = vor.u32 1.1754944e-38, %v1425
    %v1427 = vsel %vm1424, %v1426, %v1422
    %v1428 = vmul.f32 1.0, %v1427
    %v1429 = vrcp.pop %v1398
    %v1430 = vmul.f32 %v1398, %v1429
    %v1431 = vsub.f32 1.0, %v1430
    %v1432 = vmul.f32 %v1429, %v1431
    %v1433 = vadd.f32 %v1429, %v1432
    %vm1434 = vweird.f32 %v1398
    %vm1435 = vweird.f32 %v1429
    %vm1436 = vmor %vm1434, %vm1435
    %v1437 = vsel %vm1436, %v1429, %v1433
    %v1438 = vand.u32 2147483647, %v1398
    %vm1439 = vcmp.eq.f32.partialorder %v1438, 8.507059e+37
    %v1440 = vand.u32 %v1398, 2147483648
    %v1441 = vor.u32 1.1754944e-38, %v1440
    %v1442 = vsel %vm1439, %v1441, %v1437
    %v1443 = vmul.f32 1.0, %v1442
    %v1444 = vtanh.pop %v1386
    %v1445 = vmul.f32 %v1428, %v1323
    %v1446 = vmul.f32 %v1413, %v1444
    %v1447 = vadd.f32 %v1445, %v1446
    %v1448 = vtanh.pop %v1447
    %v1449 = vmul.f32 %v1443, %v1448
    %v1450 = vld [vmem:[#allocation4 + $0xe0] sm:$0xff]
    %v1451 = vld [vmem:[#allocation4 + $0xe8] sm:$0xff]
    %v1452 = vld [vmem:[#allocation4 + $0xf0] sm:$0xff]
    %v1453 = vld [vmem:[#allocation4 + $0xf8] sm:$0xff]
    %v1454 = vpack.c.bf16 %v1449, %v1449
    %1455 = vmatpush.bf16.msra.mxu0 %v551
    %1456 = vmatpush.bf16.msra.mxu0 %v547
    %1457 = vmatpush.bf16.msra.mxu0 %v543
    %1458 = vmatpush.bf16.msra.mxu0 %v539
    %1459 = vmatpush.bf16.msra.mxu0 %v535
    %1460 = vmatpush.bf16.msra.mxu0 %v531
    %1461 = vmatpush.bf16.msra.mxu0 %v527
    %1462 = vmatpush.bf16.msra.mxu0 %v523
    %1463 = vmatmul.bf16.gmra.mxu0 %v1454
    %v1464 = vpop.f32.mrf.mxu0
    %v1465 = vadd.f32 0.0, %v1464
    %v1466 = vpop.f32.mrf.mxu0
    %1467 = vdwg.mxu0
    %1468 = vmatpush.bf16.msra.mxu0 %v552
    %1469 = vmatpush.bf16.msra.mxu0 %v548
    %1470 = vmatpush.bf16.msra.mxu0 %v544
    %1471 = vmatpush.bf16.msra.mxu0 %v540
    %1472 = vmatpush.bf16.msra.mxu0 %v536
    %1473 = vmatpush.bf16.msra.mxu0 %v532
    %1474 = vmatpush.bf16.msra.mxu0 %v528
    %1475 = vmatpush.bf16.msra.mxu0 %v524
    %1476 = vmatmul.bf16.gmra.mxu0 %v1454
    %v1477 = vpop.f32.mrf.mxu0
    %v1478 = vadd.f32 0.0, %v1477
    %v1479 = vpop.f32.mrf.mxu0
    %1480 = vdwg.mxu0
    %1481 = vmatpush.bf16.msra.mxu0 %v553
    %1482 = vmatpush.bf16.msra.mxu0 %v549
    %1483 = vmatpush.bf16.msra.mxu0 %v545
    %1484 = vmatpush.bf16.msra.mxu0 %v541
    %1485 = vmatpush.bf16.msra.mxu0 %v537
    %1486 = vmatpush.bf16.msra.mxu0 %v533
    %1487 = vmatpush.bf16.msra.mxu0 %v529
    %1488 = vmatpush.bf16.msra.mxu0 %v525
    %1489 = vmatmul.bf16.gmra.mxu0 %v1454
    %v1490 = vpop.f32.mrf.mxu0
    %v1491 = vadd.f32 0.0, %v1490
    %v1492 = vpop.f32.mrf.mxu0
    %1493 = vdwg.mxu0
    %1494 = vmatpush.bf16.msra.mxu0 %v554
    %1495 = vmatpush.bf16.msra.mxu0 %v550
    %1496 = vmatpush.bf16.msra.mxu0 %v546
    %1497 = vmatpush.bf16.msra.mxu0 %v542
    %1498 = vmatpush.bf16.msra.mxu0 %v538
    %1499 = vmatpush.bf16.msra.mxu0 %v534
    %1500 = vmatpush.bf16.msra.mxu0 %v530
    %1501 = vmatpush.bf16.msra.mxu0 %v526
    %1502 = vmatmul.bf16.gmra.mxu0 %v1454
    %v1503 = vpop.f32.mrf.mxu0
    %v1504 = vadd.f32 0.0, %v1503
    %v1505 = vpop.f32.mrf.mxu0
    %1506 = vdwg.mxu0
    %v1507 = vadd.f32 %v1450, %v1465
    %v1508 = vadd.f32 %v1451, %v1478
    %v1509 = vadd.f32 %v1452, %v1491
    %v1510 = vadd.f32 %v1453, %v1504
    %v1511 = vxor.u32 %v1507, 2147483648
    %v1512 = vxor.u32 %v1508, 2147483648
    %v1513 = vxor.u32 %v1509, 2147483648
    %v1514 = vmul.f32 %v1511, 1.442695
    %v1515 = vpow.pop %v1514
    %v1516 = vmul.f32 %v1512, 1.442695
    %v1517 = vpow.pop %v1516
    %v1518 = vmul.f32 %v1513, 1.442695
    %v1519 = vpow.pop %v1518
    %v1520 = vadd.f32 %v1515, 1.0
    %v1521 = vadd.f32 %v1517, 1.0
    %v1522 = vadd.f32 %v1519, 1.0
    %v1523 = vrcp.pop %v1520
    %v1524 = vmul.f32 %v1520, %v1523
    %v1525 = vsub.f32 1.0, %v1524
    %v1526 = vmul.f32 %v1523, %v1525
    %v1527 = vadd.f32 %v1523, %v1526
    %vm1528 = vweird.f32 %v1520
    %vm1529 = vweird.f32 %v1523
    %vm1530 = vmor %vm1528, %vm1529
    %v1531 = vsel %vm1530, %v1523, %v1527
    %v1532 = vand.u32 2147483647, %v1520
    %vm1533 = vcmp.eq.f32.partialorder %v1532, 8.507059e+37
    %v1534 = vand.u32 %v1520, 2147483648
    %v1535 = vor.u32 1.1754944e-38, %v1534
    %v1536 = vsel %vm1533, %v1535, %v1531
    %v1537 = vmul.f32 1.0, %v1536
    %v1538 = vrcp.pop %v1521
    %v1539 = vmul.f32 %v1521, %v1538
    %v1540 = vsub.f32 1.0, %v1539
    %v1541 = vmul.f32 %v1538, %v1540
    %v1542 = vadd.f32 %v1538, %v1541
    %vm1543 = vweird.f32 %v1521
    %vm1544 = vweird.f32 %v1538
    %vm1545 = vmor %vm1543, %vm1544
    %v1546 = vsel %vm1545, %v1538, %v1542
    %v1547 = vand.u32 2147483647, %v1521
    %vm1548 = vcmp.eq.f32.partialorder %v1547, 8.507059e+37
    %v1549 = vand.u32 %v1521, 2147483648
    %v1550 = vor.u32 1.1754944e-38, %v1549
    %v1551 = vsel %vm1548, %v1550, %v1546
    %v1552 = vmul.f32 1.0, %v1551
    %v1553 = vrcp.pop %v1522
    %v1554 = vmul.f32 %v1522, %v1553
    %v1555 = vsub.f32 1.0, %v1554
    %v1556 = vmul.f32 %v1553, %v1555
    %v1557 = vadd.f32 %v1553, %v1556
    %vm1558 = vweird.f32 %v1522
    %vm1559 = vweird.f32 %v1553
    %vm1560 = vmor %vm1558, %vm1559
    %v1561 = vsel %vm1560, %v1553, %v1557
    %v1562 = vand.u32 2147483647, %v1522
    %vm1563 = vcmp.eq.f32.partialorder %v1562, 8.507059e+37
    %v1564 = vand.u32 %v1522, 2147483648
    %v1565 = vor.u32 1.1754944e-38, %v1564
    %v1566 = vsel %vm1563, %v1565, %v1561
    %v1567 = vmul.f32 1.0, %v1566
    %v1568 = vtanh.pop %v1510
    %v1569 = vmul.f32 %v1552, %v1447
    %v1570 = vmul.f32 %v1537, %v1568
    %v1571 = vadd.f32 %v1569, %v1570
    %v1572 = vtanh.pop %v1571
    %v1573 = vmul.f32 %v1567, %v1572
    %1574 = vst [vmem:[#allocation2] sm:$0xff] %v1573
    %1575 = vst [vmem:[#allocation3] sm:$0xff] %v1571
    // Predicated region
    $region62: #{tpu_custom_call.1} parent=1 // pred_check
      %p1576 = pneg %p87
    $region63: #{tpu_custom_call.1} parent=1 // pred_check_branch
      %1578 = sbr.rel (%p1576) target = $region65
    $region64: #{tpu_custom_call.1} parent=1 // pred_region
      %v1579 = vld [vmem:[%s0 + $0x1c] sm:$0xf]
      %v1580 = vld [vmem:[#allocation9] sm:$0xff]
      %v1581 = vld [vmem:[#allocation9 + $0x8] sm:$0xff]
      %v1582 = vld [vmem:[#allocation9 + $0x10] sm:$0xff]
      %v1583 = vld [vmem:[#allocation9 + $0x18] sm:$0xff]
      %v1584 = vld [vmem:[#allocation9 + $0x20] sm:$0xff]
      %v1585 = vld [vmem:[#allocation9 + $0x28] sm:$0xff]
      %v1586 = vld [vmem:[#allocation9 + $0x30] sm:$0xff]
      %v1587 = vld [vmem:[#allocation9 + $0x38] sm:$0xff]
      %v1588 = vld [vmem:[#allocation9 + $0x40] sm:$0xff]
      %v1589 = vld [vmem:[#allocation9 + $0x48] sm:$0xff]
      %v1590 = vld [vmem:[#allocation9 + $0x50] sm:$0xff]
      %v1591 = vld [vmem:[#allocation9 + $0x58] sm:$0xff]
      %v1592 = vld [vmem:[#allocation9 + $0x60] sm:$0xff]
      %v1593 = vld [vmem:[#allocation9 + $0x68] sm:$0xff]
      %v1594 = vld [vmem:[#allocation9 + $0x70] sm:$0xff]
      %v1595 = vld [vmem:[#allocation9 + $0x78] sm:$0xff]
      %v1596 = vld [vmem:[#allocation11] sm:$0xf]
      %v1598 = vperm.slane %v1596, 0
      %v1599 = vperm.slane %v1596, 2
      %v1600 = vperm.slane %v1596, 3
      %v1620 = vunpack.c.l.b16 %v1580
      %v1621 = vunpack.c.l.b16 %v1581
      %v1622 = vunpack.c.h.b16 %v1581
      %v1623 = vunpack.c.l.b16 %v1582
      %v1624 = vunpack.c.l.b16 %v1583
      %v1625 = vunpack.c.h.b16 %v1583
      %v1626 = vunpack.c.l.b16 %v1584
      %v1627 = vunpack.c.l.b16 %v1585
      %v1628 = vunpack.c.h.b16 %v1585
      %v1629 = vunpack.c.l.b16 %v1586
      %v1630 = vunpack.c.l.b16 %v1587
      %v1631 = vunpack.c.h.b16 %v1587
      %v1632 = vunpack.c.l.b16 %v1588
      %v1633 = vunpack.c.l.b16 %v1589
      %v1634 = vunpack.c.h.b16 %v1589
      %v1635 = vunpack.c.l.b16 %v1590
      %v1636 = vunpack.c.l.b16 %v1591
      %v1637 = vunpack.c.h.b16 %v1591
      %v1638 = vunpack.c.l.b16 %v1592
      %v1639 = vunpack.c.l.b16 %v1593
      %v1640 = vunpack.c.h.b16 %v1593
      %v1641 = vunpack.c.l.b16 %v1594
      %v1642 = vunpack.c.l.b16 %v1595
      %v1643 = vunpack.c.h.b16 %v1595
      %v1644 = vpack.c.b16 %v1623, %v1620
      %v1645 = vpack.c.b16 %v1624, %v1621
      %v1646 = vpack.c.b16 %v1625, %v1622
      %v1647 = vpack.c.b16 %v1629, %v1626
      %v1648 = vpack.c.b16 %v1630, %v1627
      %v1649 = vpack.c.b16 %v1631, %v1628
      %v1650 = vpack.c.b16 %v1635, %v1632
      %v1651 = vpack.c.b16 %v1636, %v1633
      %v1652 = vpack.c.b16 %v1637, %v1634
      %v1653 = vpack.c.b16 %v1641, %v1638
      %v1654 = vpack.c.b16 %v1642, %v1639
      %v1655 = vpack.c.b16 %v1643, %v1640
      %v1669 = vsel %vm227, %v1579, 0
      %1671 = vmatpush.bf16.msra.mxu0 0
      %1672 = vmatpush.bf16.msra.mxu0 0
      %1673 = vmatpush.bf16.msra.mxu0 0
      %1674 = vmatpush.bf16.msra.mxu0 0
      %1675 = vmatpush.bf16.msra.mxu0 %v1653
      %1676 = vmatpush.bf16.msra.mxu0 %v1650
      %1677 = vmatpush.bf16.msra.mxu0 %v1647
      %1678 = vmatpush.bf16.msra.mxu0 %v1644
      %1679 = vmatmul.bf16.gmra.mxu0 %v1669
      %v1680 = vpop.f32.mrf.mxu0
      %v1681 = vadd.f32 %v1598, %v1680
      %v1682 = vpop.f32.mrf.mxu0
      %1683 = vdwg.mxu0
      %1684 = vmatpush.bf16.msra.mxu0 0
      %1685 = vmatpush.bf16.msra.mxu0 0
      %1686 = vmatpush.bf16.msra.mxu0 0
      %1687 = vmatpush.bf16.msra.mxu0 0
      %1688 = vmatpush.bf16.msra.mxu0 %v1654
      %1689 = vmatpush.bf16.msra.mxu0 %v1651
      %1690 = vmatpush.bf16.msra.mxu0 %v1648
      %1691 = vmatpush.bf16.msra.mxu0 %v1645
      %1692 = vmatmul.bf16.gmra.mxu0 %v1669
      %v1693 = vpop.f32.mrf.mxu0
      %v1694 = vadd.f32 %v1599, %v1693
      %v1695 = vpop.f32.mrf.mxu0
      %1696 = vdwg.mxu0
      %1697 = vmatpush.bf16.msra.mxu0 0
      %1698 = vmatpush.bf16.msra.mxu0 0
      %1699 = vmatpush.bf16.msra.mxu0 0
      %1700 = vmatpush.bf16.msra.mxu0 0
      %1701 = vmatpush.bf16.msra.mxu0 %v1655
      %1702 = vmatpush.bf16.msra.mxu0 %v1652
      %1703 = vmatpush.bf16.msra.mxu0 %v1649
      %1704 = vmatpush.bf16.msra.mxu0 %v1646
      %1705 = vmatmul.bf16.gmra.mxu0 %v1669
      %v1706 = vpop.f32.mrf.mxu0
      %v1707 = vadd.f32 %v1600, %v1706
      %v1708 = vpop.f32.mrf.mxu0
      %1709 = vdwg.mxu0
      %v1710 = vxor.u32 %v1681, 2147483648
      %v1711 = vmul.f32 %v1710, 1.442695
      %v1712 = vpow.pop %v1711
      %v1713 = vadd.f32 %v1712, 1.0
      %v1714 = vrcp.pop %v1713
      %v1715 = vmul.f32 %v1713, %v1714
      %v1716 = vsub.f32 1.0, %v1715
      %v1717 = vmul.f32 %v1714, %v1716
      %v1718 = vadd.f32 %v1714, %v1717
      %vm1719 = vweird.f32 %v1713
      %vm1720 = vweird.f32 %v1714
      %vm1721 = vmor %vm1719, %vm1720
      %v1722 = vsel %vm1721, %v1714, %v1718
      %v1723 = vand.u32 2147483647, %v1713
      %vm1724 = vcmp.eq.f32.partialorder %v1723, 8.507059e+37
      %v1725 = vand.u32 %v1713, 2147483648
      %v1726 = vor.u32 1.1754944e-38, %v1725
      %v1727 = vsel %vm1724, %v1726, %v1722
      %v1728 = vmul.f32 1.0, %v1727
      %v1729 = vxor.u32 %v1694, 2147483648
      %v1730 = vmul.f32 %v1729, 1.442695
      %v1731 = vpow.pop %v1730
      %v1732 = vadd.f32 %v1731, 1.0
      %v1733 = vrcp.pop %v1732
      %v1734 = vmul.f32 %v1732, %v1733
      %v1735 = vsub.f32 1.0, %v1734
      %v1736 = vmul.f32 %v1733, %v1735
      %v1737 = vadd.f32 %v1733, %v1736
      %vm1738 = vweird.f32 %v1732
      %vm1739 = vweird.f32 %v1733
      %vm1740 = vmor %vm1738, %vm1739
      %v1741 = vsel %vm1740, %v1733, %v1737
      %v1742 = vand.u32 2147483647, %v1732
      %vm1743 = vcmp.eq.f32.partialorder %v1742, 8.507059e+37
      %v1744 = vand.u32 %v1732, 2147483648
      %v1745 = vor.u32 1.1754944e-38, %v1744
      %v1746 = vsel %vm1743, %v1745, %v1741
      %v1747 = vmul.f32 1.0, %v1746
      %v1748 = vtanh.pop %v1707
      %v1749 = vmul.f32 %v1728, %v1748
      %v1750 = vtanh.pop %v1749
      %v1751 = vmul.f32 %v1747, %v1750
      %v1752 = vpack.c.bf16 %v1573, %v1573
      %v1753 = vld [vmem:[%s6] sm:$0xf]
      %v1754 = vld [vmem:[%s6 + $0x4] sm:$0xf]
      %v1755 = vld [vmem:[%s6 + $0x8] sm:$0xf]
      %v1756 = vld [vmem:[%s6 + $0xc] sm:$0xf]
      %v1757 = vld [vmem:[%s6 + $0x10] sm:$0xf]
      %v1758 = vld [vmem:[%s6 + $0x14] sm:$0xf]
      %v1759 = vld [vmem:[%s6 + $0x18] sm:$0xf]
      %v1760 = vld [vmem:[%s6 + $0x1c] sm:$0xf]
      %v1761 = vld [vmem:[%s6 + $0x20] sm:$0xf]
      %v1762 = vld [vmem:[%s6 + $0x24] sm:$0xf]
      %v1763 = vld [vmem:[%s6 + $0x28] sm:$0xf]
      %v1764 = vld [vmem:[%s6 + $0x2c] sm:$0xf]
      %v1765 = vld [vmem:[%s6 + $0x30] sm:$0xf]
      %v1766 = vld [vmem:[%s6 + $0x34] sm:$0xf]
      %v1767 = vld [vmem:[%s6 + $0x38] sm:$0xf]
      %v1768 = vld [vmem:[%s6 + $0x3c] sm:$0xf]
      %v1769 = vpack.c.bf16 %v1751, %v1751
      %v1770 = vld [vmem:[%s7] sm:$0xf]
      %v1771 = vld [vmem:[%s7 + $0x4] sm:$0xf]
      %v1772 = vld [vmem:[%s7 + $0x8] sm:$0xf]
      %v1773 = vld [vmem:[%s7 + $0xc] sm:$0xf]
      %v1774 = vld [vmem:[%s7 + $0x10] sm:$0xf]
      %v1775 = vld [vmem:[%s7 + $0x14] sm:$0xf]
      %v1776 = vld [vmem:[%s7 + $0x18] sm:$0xf]
      %v1777 = vld [vmem:[%s7 + $0x1c] sm:$0xf]
      %v1778 = vld [vmem:[%s7 + $0x20] sm:$0xf]
      %v1779 = vld [vmem:[%s7 + $0x24] sm:$0xf]
      %v1780 = vld [vmem:[%s7 + $0x28] sm:$0xf]
      %v1781 = vld [vmem:[%s7 + $0x2c] sm:$0xf]
      %v1782 = vld [vmem:[%s7 + $0x30] sm:$0xf]
      %v1783 = vld [vmem:[%s7 + $0x34] sm:$0xf]
      %v1784 = vld [vmem:[%s7 + $0x38] sm:$0xf]
      %v1785 = vld [vmem:[%s7 + $0x3c] sm:$0xf]
      %v1802 = vunpack.c.l.b16 %v1770
      %v1803 = vunpack.c.l.b16 %v1771
      %v1804 = vunpack.c.l.b16 %v1772
      %v1805 = vunpack.c.l.b16 %v1773
      %v1806 = vunpack.c.l.b16 %v1774
      %v1807 = vunpack.c.l.b16 %v1775
      %v1808 = vunpack.c.l.b16 %v1776
      %v1809 = vunpack.c.l.b16 %v1777
      %v1810 = vunpack.c.l.b16 %v1778
      %v1811 = vunpack.c.l.b16 %v1779
      %v1812 = vunpack.c.l.b16 %v1780
      %v1813 = vunpack.c.l.b16 %v1781
      %v1814 = vunpack.c.l.b16 %v1782
      %v1815 = vunpack.c.l.b16 %v1783
      %v1816 = vunpack.c.l.b16 %v1784
      %v1817 = vunpack.c.l.b16 %v1785
      %v1818 = vpack.c.b16 %v1803, %v1802
      %v1819 = vpack.c.b16 %v1805, %v1804
      %v1820 = vpack.c.b16 %v1807, %v1806
      %v1821 = vpack.c.b16 %v1809, %v1808
      %v1822 = vpack.c.b16 %v1811, %v1810
      %v1823 = vpack.c.b16 %v1813, %v1812
      %v1824 = vpack.c.b16 %v1815, %v1814
      %v1825 = vpack.c.b16 %v1817, %v1816
      %1834 = vmatpush.bf16.msra.mxu0 %v1825
      %1835 = vmatpush.bf16.msra.mxu0 %v1824
      %1836 = vmatpush.bf16.msra.mxu0 %v1823
      %1837 = vmatpush.bf16.msra.mxu0 %v1822
      %1838 = vmatpush.bf16.msra.mxu0 %v1821
      %1839 = vmatpush.bf16.msra.mxu0 %v1820
      %1840 = vmatpush.bf16.msra.mxu0 %v1819
      %1841 = vmatpush.bf16.msra.mxu0 %v1818
      %1842 = vmatmul.bf16.gmra.mxu0 %v1769
      %v1843 = vpop.f32.mrf.mxu0
      %v1844 = vadd.f32 0.0, %v1843
      %v1845 = vpop.f32.mrf.mxu0
      %1846 = vdwg.mxu0
      %v1863 = vunpack.c.l.b16 %v1753
      %v1864 = vunpack.c.l.b16 %v1754
      %v1865 = vunpack.c.l.b16 %v1755
      %v1866 = vunpack.c.l.b16 %v1756
      %v1867 = vunpack.c.l.b16 %v1757
      %v1868 = vunpack.c.l.b16 %v1758
      %v1869 = vunpack.c.l.b16 %v1759
      %v1870 = vunpack.c.l.b16 %v1760
      %v1871 = vunpack.c.l.b16 %v1761
      %v1872 = vunpack.c.l.b16 %v1762
      %v1873 = vunpack.c.l.b16 %v1763
      %v1874 = vunpack.c.l.b16 %v1764
      %v1875 = vunpack.c.l.b16 %v1765
      %v1876 = vunpack.c.l.b16 %v1766
      %v1877 = vunpack.c.l.b16 %v1767
      %v1878 = vunpack.c.l.b16 %v1768
      %v1879 = vpack.c.b16 %v1864, %v1863
      %v1880 = vpack.c.b16 %v1866, %v1865
      %v1881 = vpack.c.b16 %v1868, %v1867
      %v1882 = vpack.c.b16 %v1870, %v1869
      %v1883 = vpack.c.b16 %v1872, %v1871
      %v1884 = vpack.c.b16 %v1874, %v1873
      %v1885 = vpack.c.b16 %v1876, %v1875
      %v1886 = vpack.c.b16 %v1878, %v1877
      %1895 = vmatpush.bf16.msra.mxu0 %v1886
      %1896 = vmatpush.bf16.msra.mxu0 %v1885
      %1897 = vmatpush.bf16.msra.mxu0 %v1884
      %1898 = vmatpush.bf16.msra.mxu0 %v1883
      %1899 = vmatpush.bf16.msra.mxu0 %v1882
      %1900 = vmatpush.bf16.msra.mxu0 %v1881
      %1901 = vmatpush.bf16.msra.mxu0 %v1880
      %1902 = vmatpush.bf16.msra.mxu0 %v1879
      %1903 = vmatmul.bf16.gmra.mxu0 %v1752
      %v1904 = vpop.f32.mrf.mxu0
      %v1905 = vadd.f32 %v1844, %v1904
      %v1906 = vpop.f32.mrf.mxu0
      %1907 = vdwg.mxu0
      %v1908 = vld [vmem:[%s8] sm:$0x1]
      %v1910 = vperm.slane %v1908, 0
      %v1912 = vadd.f32 %v1905, %v1910
      %v1913 = vmax.f32 %v1912, 0.0
      %v1914 = vld [vmem:[%s9] sm:$0x1]
      %v1916 = vperm.slane %v1914, 0
      %v1918 = vmul.f32 %v1913, %v1916
      %v1919 = vsel %vm227, %v1918, 0.0
      %1920 = vadd.xlane.f32.xlu0 %v1919
      %v1921 = vpop.xlane.xlu0 %1920
      %v1922 = vld [vmem:[#allocation5] sm:$0x1]
      %v1924 = vperm.slane %v1922, 0
      %v1926 = vadd.f32 %v1921, %v1924
      %v1927 = vxor.u32 %v1926, 2147483648
      %v1928 = vmul.f32 %v1927, 1.442695
      %v1929 = vpow.pop %v1928
      %v1930 = vadd.f32 %v1929, 1.0
      %v1931 = vrcp.pop %v1930
      %v1932 = vmul.f32 %v1930, %v1931
      %v1933 = vsub.f32 1.0, %v1932
      %v1934 = vmul.f32 %v1931, %v1933
      %v1935 = vadd.f32 %v1931, %v1934
      %vm1936 = vweird.f32 %v1930
      %vm1937 = vweird.f32 %v1931
      %vm1938 = vmor %vm1936, %vm1937
      %v1939 = vsel %vm1938, %v1931, %v1935
      %v1940 = vand.u32 2147483647, %v1930
      %vm1941 = vcmp.eq.f32.partialorder %v1940, 8.507059e+37
      %v1942 = vand.u32 %v1930, 2147483648
      %v1943 = vor.u32 1.1754944e-38, %v1942
      %v1944 = vsel %vm1941, %v1943, %v1939
      %v1945 = vmul.f32 1.0, %v1944
      %1947 = vset.pattern.permute.xlu0 0
      %1948 = vperm.xlu0 %1947, %v1945
      %v1949 = vpop.permute.xlu0 %1948
      %1951 = vst [vmem:[#allocation12] sm:$0xff] %v1949
    $region65: #{tpu_custom_call.1} parent=1 // pred_fallthru
      _
    // Predicated region
    $region66: #{tpu_custom_call.1} parent=1 // pred_check
      _
    $region67: #{tpu_custom_call.1} parent=1 // pred_check_branch
      %1953 = sbr.rel (0) target = $region69
    $region68: #{tpu_custom_call.1} parent=1 // pred_region
      %1955 = vsyncadd [#allocation8], 0
      %s1957 = sshll.u32 [#allocation12], 4
      %s1958 = int_to_ptr.vmem [resolvable:$true] %s1957
      %s1959 = sshll.u32 %s11, 4
      %s1960 = int_to_ptr.hbm [resolvable:$true] %s1959
      %1962 = dma.vmem_to_hbm [thread:$0]  %s1958, 128, %s1960, [#allocation8]
    $region69: #{tpu_custom_call.1} parent=1 // pred_fallthru
      _
    // Predicated region
    $region70: #{tpu_custom_call.1} parent=1 // pred_check
      _
    $region71: #{tpu_custom_call.1} parent=1 // pred_check_branch
      %1964 = sbr.rel (0) target = $region73
    $region72: #{tpu_custom_call.1} parent=1 // pred_region
      %1966 = dma.done [#allocation8], 128
    $region73: #{tpu_custom_call.1} parent=1 // pred_fallthru
      _
    %1967 = vsyncpa [#allocation7], 1
    %1968 = vsyncpa [#allocation10], 1
    %1969 = vsyncpa [#allocation8], 1

</llo_original>
